<compile_context>
chip_gen: v5e
topology: v5e:2x2
jax: 0.10.0
libtpu: 0.0.40
codegen_flags: <defaults>
</compile_context>

<pallas_src>
import math

import jax
import jax.numpy as jnp
from jax.experimental import pallas as pl
from jax.experimental.pallas import tpu as pltpu


def _round_up(x, m):
    return ((x + m - 1) // m) * m


# ---------------------------------------------------------------------------
# Fused kernel: all LSTM layers (wavefront-interleaved) + final Linear in one
# grid-less pallas_call.
#
# Ref layout:
#   x_ref                          (S*B_pad, Fp)     layer-0 input, time-major rows
#   per layer l: wih_l (in_p, 4*Hcell), whh_l (Hcell, 4*Hcell), b_l (1, 4*Hcell)
#   fc_w (Hcell, lseq), fc_b (1, lseq)
#   out_ref (S, lseq)
#   scratch: gx0_sc (S*B_pad, 4*Hcell)  hoisted layer-0 input projection
#            hseq_sc (S*B_pad, Hcell)   last layer h for every time step
# ---------------------------------------------------------------------------
def _make_fused_kernel(S, B_pad, b_idx, Hcell, nlayers):
    G = 4 * Hcell
    K_total = S + nlayers - 1          # wavefront iterations

    def kernel(x_ref, *refs):
        layer_refs = refs[: 3 * nlayers]
        fc_w_ref, fc_b_ref, out_ref, gx0_sc, hseq_sc = refs[3 * nlayers:]

        wih_refs = [layer_refs[3 * l + 0] for l in range(nlayers)]
        whh_refs = [layer_refs[3 * l + 1] for l in range(nlayers)]
        b_refs = [layer_refs[3 * l + 2] for l in range(nlayers)]

        # Hoisted, time-independent layer-0 input projection (bias folded in):
        # one big MXU matmul over all S*B_pad rows.
        gx0_sc[...] = (
            jnp.dot(x_ref[...], wih_refs[0][...],
                    preferred_element_type=jnp.float32)
            + b_refs[0][...]
        )

        # Per-lane affine turning tanh(pre-scaled gates) into the right
        # nonlinearity (hoisted out of the recurrence):
        #   i/f/o lanes: 0.5*t + 0.5  == sigmoid(raw) since the 0.5 pre-scale
        #                                is folded into the weights/bias,
        #   g lanes:     t            == tanh(raw).
        lane = jax.lax.broadcasted_iota(jnp.int32, (1, G), 1)
        is_g = jnp.logical_and(lane >= 2 * Hcell, lane < 3 * Hcell)
        alpha = jnp.where(is_g, 1.0, 0.5).astype(jnp.float32)
        beta = jnp.where(is_g, 0.0, 0.5).astype(jnp.float32)

        # Loop-invariant bias loads for layers > 0, hoisted.
        b_vals = [None] + [b_refs[l][...] for l in range(1, nlayers)]

        def cell(gates, h_old, c_old):
            t = jnp.tanh(gates)            # one contiguous EUP push per step
            act = alpha * t + beta         # i/f/o -> sigmoid, g -> tanh
            i_g = act[:, 0 * Hcell:1 * Hcell]
            f_g = act[:, 1 * Hcell:2 * Hcell]
            g_g = act[:, 2 * Hcell:3 * Hcell]
            o_g = act[:, 3 * Hcell:4 * Hcell]
            c_new = f_g * c_old + i_g * g_g
            h_new = o_g * jnp.tanh(c_new)
            return h_new, c_new

        def body(k, carry):
            # Wavefront: layer l processes time step t = k - l.  Every layer
            # reads only OLD carry values, so all layers' per-step chains are
            # independent within one iteration.
            new_carry = []
            for l in range(nlayers):
                h_old, c_old = carry[2 * l], carry[2 * l + 1]
                t_l = k - l
                if l == 0:
                    r0 = pl.multiple_of(jnp.minimum(k, S - 1) * B_pad, B_pad)
                    gates = gx0_sc[pl.ds(r0, B_pad), :] + jnp.dot(
                        h_old, whh_refs[0][...],
                        preferred_element_type=jnp.float32)
                else:
                    h_prev = carry[2 * (l - 1)]   # previous layer, previous iter
                    gates = (
                        jnp.dot(h_prev, wih_refs[l][...],
                                preferred_element_type=jnp.float32)
                        + b_vals[l]
                        + jnp.dot(h_old, whh_refs[l][...],
                                  preferred_element_type=jnp.float32)
                    )
                h_new, c_new = cell(gates, h_old, c_old)

                always_active = (l == 0 and nlayers == 1)
                if always_active:
                    h_keep, c_keep = h_new, c_new
                else:
                    active = jnp.logical_and(t_l >= 0, t_l < S)
                    h_keep = jnp.where(active, h_new, h_old)
                    c_keep = jnp.where(active, c_new, c_old)

                if l == nlayers - 1:
                    # Full-tile (unmasked-sublane) store; garbage iterations
                    # (t_l < 0) write the carried zeros to row block 0 and are
                    # overwritten when the real step 0 runs.
                    rw = pl.multiple_of(jnp.maximum(t_l, 0) * B_pad, B_pad)
                    hseq_sc[pl.ds(rw, B_pad), :] = h_keep
                new_carry += [h_keep, c_keep]
            return tuple(new_carry)

        zeros = jnp.zeros((B_pad, Hcell), jnp.float32)
        init = tuple([zeros] * (2 * nlayers))
        jax.lax.fori_loop(0, K_total, body, init,
                          unroll=True if K_total <= 32 else 8)

        # Epilogue: gather the consumed batch row of every time step from the
        # (S*B_pad, Hcell) slab with a one-shot selection matmul (keeps all
        # in-loop stores full-tile; the MXU is idle here), then fuse the fc.
        row_id = jax.lax.broadcasted_iota(jnp.int32, (S, S * B_pad), 0)
        col_id = jax.lax.broadcasted_iota(jnp.int32, (S, S * B_pad), 1)
        sel = (col_id == row_id * B_pad + b_idx).astype(jnp.float32)
        rows = jnp.dot(sel, hseq_sc[...], preferred_element_type=jnp.float32)
        out_ref[...] = (
            jnp.dot(rows, fc_w_ref[...], preferred_element_type=jnp.float32)
            + fc_b_ref[...]
        ).astype(out_ref.dtype)

    return kernel


# ---------------------------------------------------------------------------
# Wrapper: slice the consumed batch row, pad to TPU-friendly shapes, launch.
# ---------------------------------------------------------------------------
def lstm_forward(x, kparams):
    """x: (S, B, nfeats) float32 -> (S, lseq), matching the PyTorch module."""
    S, B, F = x.shape
    Hcell = kparams["Hcell"]
    Fp = kparams["Fp"]
    lseq = kparams["lseq"]
    nlayers = len(kparams["layers"])
    G = 4 * Hcell

    # The module consumes out[:, -1, :] == the LAST BATCH ROW (batch_first=False),
    # and LSTM batch rows are independent, so only that row's recurrence is run.
    # TODO(synk): this faithfully reproduces what is likely an upstream modeling
    #             bug (`out[-1]`, the last time step, was probably intended).
    xs = x[:, B - 1:B, :]
    B_pad = 8                                            # sublane quantum
    xp = jnp.pad(xs, ((0, 0), (0, B_pad - 1), (0, Fp - F)))
    x2d = xp.reshape(S * B_pad, Fp)                      # time-major rows

    args = [x2d]
    for (wih, whh, b) in kparams["layers"]:
        args += [wih, whh, b]
    args += [kparams["fc_w"], kparams["fc_b"]]

    vmem = pl.BlockSpec(memory_space=pltpu.MemorySpace.VMEM)
    kernel = _make_fused_kernel(S, B_pad, 0, Hcell, nlayers)

    return pl.pallas_call(
        kernel,
        out_shape=jax.ShapeDtypeStruct((S, lseq), x.dtype),
        in_specs=[vmem] * len(args),
        out_specs=vmem,
        scratch_shapes=[
            pltpu.VMEM((S * B_pad, G), jnp.float32),      # hoisted layer-0 gate slab
            pltpu.VMEM((S * B_pad, Hcell), jnp.float32),  # last-layer h, all steps
        ],
        compiler_params=pltpu.CompilerParams(
            vmem_limit_bytes=32 * 1024 * 1024,   # explicit; total use is << 1 MiB here
        ),
    )(*args)


# ---------------------------------------------------------------------------
# Parameter init (PyTorch-style) and kernel-layout preparation.
# ---------------------------------------------------------------------------
def init_raw_params(key, nfeats, hidden_size, nlayers, lseq, dtype=jnp.float32):
    """Deterministic U(-1/sqrt(H), 1/sqrt(H)) init, PyTorch-native shapes."""
    stdv = 1.0 / math.sqrt(hidden_size)
    layers = []
    for layer in range(nlayers):
        in_sz = nfeats if layer == 0 else hidden_size
        key, k1, k2, k3, k4 = jax.random.split(key, 5)
        w_ih = jax.random.uniform(k1, (4 * hidden_size, in_sz), dtype, -stdv, stdv)
        w_hh = jax.random.uniform(k2, (4 * hidden_size, hidden_size), dtype, -stdv, stdv)
        b_ih = jax.random.uniform(k3, (4 * hidden_size,), dtype, -stdv, stdv)
        b_hh = jax.random.uniform(k4, (4 * hidden_size,), dtype, -stdv, stdv)
        layers.append((w_ih, w_hh, b_ih, b_hh))
    key, k5, k6 = jax.random.split(key, 3)
    fc_w = jax.random.uniform(k5, (lseq, hidden_size), dtype, -stdv, stdv)
    fc_b = jax.random.uniform(k6, (lseq,), dtype, -stdv, stdv)
    return {"layers": layers, "fc_w": fc_w, "fc_b": fc_b,
            "nfeats": nfeats, "hidden": hidden_size, "lseq": lseq}


def _prep_gate_w(w, H, Hcell, in_sz, in_pad, gate_scale):
    """(4H, in) PyTorch gate-stacked weight -> transposed (in_pad, 4*Hcell) with
    packed gates (gate k at columns [k*Hcell, k*Hcell+H)), zero-padded, and the
    sigmoid 0.5 pre-scale folded into the i/f/o gates."""
    w4 = w.reshape(4, H, in_sz) * gate_scale.reshape(4, 1, 1).astype(w.dtype)
    w4 = jnp.pad(w4, ((0, 0), (0, Hcell - H), (0, in_pad - in_sz)))
    return jnp.transpose(w4, (2, 0, 1)).reshape(in_pad, 4 * Hcell)


def _prep_gate_b(b, H, Hcell, gate_scale):
    b4 = b.reshape(4, H) * gate_scale.reshape(4, 1).astype(b.dtype)
    return jnp.pad(b4, ((0, 0), (0, Hcell - H))).reshape(1, 4 * Hcell)


def prepare_params(raw):
    """Packed-gate layout: per-gate width Hcell = round_up(H, 32) so the packed
    gate slab (4*Hcell lanes) is a multiple of 128 lanes — for H=32 all four
    gates fit in ONE 128-lane block.  Weights are transposed, b_ih+b_hh folded,
    and the sigmoid 0.5 pre-scale folded into the i/f/o gate columns.  Padding
    is exact: padded gate columns are 0 => i=f=o=0.5, g=0 => padded h/c stay 0
    forever and padded W_hh / fc_w rows contribute nothing."""
    H, F, lseq = raw["hidden"], raw["nfeats"], raw["lseq"]
    Hcell = _round_up(H, 32)              # 4*Hcell % 128 == 0
    Fp = _round_up(F, 8)
    gate_scale = jnp.array([0.5, 0.5, 1.0, 0.5], jnp.float32)   # i, f, g, o
    layers = []
    for layer, (w_ih, w_hh, b_ih, b_hh) in enumerate(raw["layers"]):
        in_sz, in_pad = (F, Fp) if layer == 0 else (H, Hcell)
        layers.append((
            _prep_gate_w(w_ih, H, Hcell, in_sz, in_pad, gate_scale),
            _prep_gate_w(w_hh, H, Hcell, H, Hcell, gate_scale),
            _prep_gate_b(b_ih + b_hh, H, Hcell, gate_scale),
        ))
    fc_w = jnp.pad(raw["fc_w"].T, ((0, Hcell - H), (0, 0)))     # (Hcell, lseq)
    fc_b = raw["fc_b"].reshape(1, lseq)
    return {"layers": layers, "fc_w": fc_w, "fc_b": fc_b,
            "Hcell": Hcell, "Fp": Fp, "lseq": lseq}


# ---------------------------------------------------------------------------
# Pure-JAX reference (for correctness check only).
# ---------------------------------------------------------------------------
def lstm_reference(x, raw):
    h_seq = x
    B = x.shape[1]
    for (w_ih, w_hh, b_ih, b_hh) in raw["layers"]:
        H = w_hh.shape[1]

        def step(carry, x_t):
            h, c = carry
            gates = x_t @ w_ih.T + b_ih + h @ w_hh.T + b_hh
            i, f, g, o = jnp.split(gates, 4, axis=-1)
            i = jax.nn.sigmoid(i)
            f = jax.nn.sigmoid(f)
            g = jnp.tanh(g)
            o = jax.nn.sigmoid(o)
            c = f * c + i * g
            h = o * jnp.tanh(c)
            return (h, c), h

        init = (jnp.zeros((B, H), x.dtype), jnp.zeros((B, H), x.dtype))
        _, h_seq = jax.lax.scan(step, init, h_seq)
    h_last = h_seq[:, -1, :]                 # last *batch* index, as in the module
    return h_last @ raw["fc_w"].T + raw["fc_b"]


if __name__ == "__main__":
    # Config consistent with the module:
    #   cfg.data.nfeats = 8, params.hidden_size = 32, params.nlayers = 2,
    #   params.dropout = 0.0, cfg.data.lseq = 4
    S, B = 8, 2                      # (seq, batch) — time-major, PyTorch default
    NFEATS, HIDDEN, NLAYERS, LSEQ = 8, 32, 2, 4

    key = jax.random.PRNGKey(0)
    key, kx, kp = jax.random.split(key, 3)
    x = jax.random.normal(kx, (S, B, NFEATS), dtype=jnp.float32)

    raw = init_raw_params(kp, NFEATS, HIDDEN, NLAYERS, LSEQ)
    kparams = prepare_params(raw)

    out = lstm_forward(x, kparams)
    out = jax.block_until_ready(out)
    assert out.shape == (S, LSEQ), out.shape

    ref = lstm_reference(x, raw)
    assert jnp.allclose(out, ref, atol=1e-2, rtol=1e-2), float(
        jnp.max(jnp.abs(out - ref)))

    print("KERNEL_OK")
</pallas_src>

<mosaic_0001>
module attributes {stable_mosaic.version = 11 : i64} {
  func.func @kernel(%arg0: memref<64x8xf32, #tpu.memory_space<vmem>>, %arg1: memref<8x128xf32, #tpu.memory_space<vmem>>, %arg2: memref<32x128xf32, #tpu.memory_space<vmem>>, %arg3: memref<1x128xf32, #tpu.memory_space<vmem>>, %arg4: memref<32x128xf32, #tpu.memory_space<vmem>>, %arg5: memref<32x128xf32, #tpu.memory_space<vmem>>, %arg6: memref<1x128xf32, #tpu.memory_space<vmem>>, %arg7: memref<32x4xf32, #tpu.memory_space<vmem>>, %arg8: memref<1x4xf32, #tpu.memory_space<vmem>>, %arg9: memref<8x4xf32, #tpu.memory_space<vmem>>, %arg10: memref<64x128xf32, #tpu.memory_space<vmem>>, %arg11: memref<64x32xf32, #tpu.memory_space<vmem>>) attributes {dimension_semantics = [], scalar_prefetch = 0 : i64, scratch_operands = 2 : i64, tpu.core_type = #tpu.core_type<tc>} {
    %c0 = arith.constant 0 : index
    %c0_0 = arith.constant 0 : index
    %0 = vector.load %arg0[%c0, %c0_0] : memref<64x8xf32, #tpu.memory_space<vmem>>, vector<64x8xf32>
    %c0_1 = arith.constant 0 : index
    %c0_2 = arith.constant 0 : index
    %1 = vector.load %arg1[%c0_1, %c0_2] : memref<8x128xf32, #tpu.memory_space<vmem>>, vector<8x128xf32>
    %cst = arith.constant dense<0.000000e+00> : vector<64x128xf32>
    %2 = tpu.matmul %0, %1, %cst {dimension_numbers = #tpu.dot_dimension_numbers<[1], [0], [0], [1], [0, 0, 1, 1], [], []>} : vector<64x8xf32>, vector<8x128xf32>, vector<64x128xf32> -> vector<64x128xf32>
    %c0_3 = arith.constant 0 : index
    %c0_4 = arith.constant 0 : index
    %3 = vector.load %arg3[%c0_3, %c0_4] : memref<1x128xf32, #tpu.memory_space<vmem>>, vector<1x128xf32>
    %4 = vector.broadcast %3 : vector<1x128xf32> to vector<64x128xf32>
    %5 = arith.addf %2, %4 : vector<64x128xf32>
    %c0_5 = arith.constant 0 : index
    %c0_6 = arith.constant 0 : index
    %6 = vector.load %arg10[%c0_5, %c0_6] : memref<64x128xf32, #tpu.memory_space<vmem>>, vector<64x128xf32>
    tpu.vector_store %arg10[%c0_5, %c0_6], %5 {strides = array<i32>} : memref<64x128xf32, #tpu.memory_space<vmem>>, vector<64x128xf32>,
    %7 = tpu.iota {dimensions = array<i32: 1>} : vector<1x128xi32>
    %c64_i32 = arith.constant 64 : i32
    %8 = vector.broadcast %c64_i32 : i32 to vector<1x128xi32>
    %9 = arith.cmpi sge, %7, %8 : vector<1x128xi32>
    %c96_i32 = arith.constant 96 : i32
    %10 = vector.broadcast %c96_i32 : i32 to vector<1x128xi32>
    %11 = arith.cmpi slt, %7, %10 : vector<1x128xi32>
    %12 = arith.andi %9, %11 : vector<1x128xi1>
    %cst_7 = arith.constant 1.000000e+00 : f32
    %cst_8 = arith.constant 5.000000e-01 : f32
    %13 = vector.broadcast %cst_7 : f32 to vector<1x128xf32>
    %14 = vector.broadcast %cst_8 : f32 to vector<1x128xf32>
    %15 = arith.select %12, %13, %14 : vector<1x128xi1>, vector<1x128xf32>
    %cst_9 = arith.constant 0.000000e+00 : f32
    %cst_10 = arith.constant 5.000000e-01 : f32
    %16 = vector.broadcast %cst_9 : f32 to vector<1x128xf32>
    %17 = vector.broadcast %cst_10 : f32 to vector<1x128xf32>
    %18 = arith.select %12, %16, %17 : vector<1x128xi1>, vector<1x128xf32>
    %c0_11 = arith.constant 0 : index
    %c0_12 = arith.constant 0 : index
    %19 = vector.load %arg6[%c0_11, %c0_12] : memref<1x128xf32, #tpu.memory_space<vmem>>, vector<1x128xf32>
    %cst_13 = arith.constant 0.000000e+00 : f32
    %20 = vector.broadcast %cst_13 : f32 to vector<8x32xf32>
    %c0_i32 = arith.constant 0 : i32
    %c0_i32_14 = arith.constant 0 : i32
    %21 = arith.subi %c0_i32, %c0_i32_14 : i32
    %c7_i32 = arith.constant 7 : i32
    %22 = arith.minsi %c0_i32, %c7_i32 : i32
    %c8_i32 = arith.constant 8 : i32
    %23 = arith.muli %22, %c8_i32 : i32
    %24 = tpu.assume_multiple %23, 8 : i32
    %25 = arith.index_cast %24 : i32 to index
    %c0_15 = arith.constant 0 : index
    %26 = vector.load %arg10[%25, %c0_15] : memref<64x128xf32, #tpu.memory_space<vmem>>, vector<8x128xf32>
    %c0_16 = arith.constant 0 : index
    %c0_17 = arith.constant 0 : index
    %27 = vector.load %arg2[%c0_16, %c0_17] : memref<32x128xf32, #tpu.memory_space<vmem>>, vector<32x128xf32>
    %cst_18 = arith.constant dense<0.000000e+00> : vector<8x128xf32>
    %28 = tpu.matmul %20, %27, %cst_18 {dimension_numbers = #tpu.dot_dimension_numbers<[1], [0], [0], [1], [0, 0, 1, 1], [], []>} : vector<8x32xf32>, vector<32x128xf32>, vector<8x128xf32> -> vector<8x128xf32>
    %29 = arith.addf %26, %28 : vector<8x128xf32>
    %30 = math.tanh %29 : vector<8x128xf32>
    %31 = vector.broadcast %15 : vector<1x128xf32> to vector<8x128xf32>
    %32 = arith.mulf %31, %30 : vector<8x128xf32>
    %33 = vector.broadcast %18 : vector<1x128xf32> to vector<8x128xf32>
    %34 = arith.addf %32, %33 : vector<8x128xf32>
    %35 = vector.extract_strided_slice %34 {offsets = [0, 0], sizes = [8, 32], strides = [1, 1]} : vector<8x128xf32> to vector<8x32xf32>
    %36 = vector.extract_strided_slice %34 {offsets = [0, 32], sizes = [8, 32], strides = [1, 1]} : vector<8x128xf32> to vector<8x32xf32>
    %37 = vector.extract_strided_slice %34 {offsets = [0, 64], sizes = [8, 32], strides = [1, 1]} : vector<8x128xf32> to vector<8x32xf32>
    %38 = vector.extract_strided_slice %34 {offsets = [0, 96], sizes = [8, 32], strides = [1, 1]} : vector<8x128xf32> to vector<8x32xf32>
    %39 = arith.mulf %36, %20 : vector<8x32xf32>
    %40 = arith.mulf %35, %37 : vector<8x32xf32>
    %41 = arith.addf %39, %40 : vector<8x32xf32>
    %42 = math.tanh %41 : vector<8x32xf32>
    %43 = arith.mulf %38, %42 : vector<8x32xf32>
    %c0_i32_19 = arith.constant 0 : i32
    %44 = arith.cmpi sge, %21, %c0_i32_19 : i32
    %c8_i32_20 = arith.constant 8 : i32
    %45 = arith.cmpi slt, %21, %c8_i32_20 : i32
    %46 = arith.andi %44, %45 : i1
    %47 = arith.select %46, %43, %20 : vector<8x32xf32>
    %48 = arith.select %46, %41, %20 : vector<8x32xf32>
    %c1_i32 = arith.constant 1 : i32
    %49 = arith.subi %c0_i32, %c1_i32 : i32
    %c0_21 = arith.constant 0 : index
    %c0_22 = arith.constant 0 : index
    %50 = vector.load %arg4[%c0_21, %c0_22] : memref<32x128xf32, #tpu.memory_space<vmem>>, vector<32x128xf32>
    %cst_23 = arith.constant dense<0.000000e+00> : vector<8x128xf32>
    %51 = tpu.matmul %20, %50, %cst_23 {dimension_numbers = #tpu.dot_dimension_numbers<[1], [0], [0], [1], [0, 0, 1, 1], [], []>} : vector<8x32xf32>, vector<32x128xf32>, vector<8x128xf32> -> vector<8x128xf32>
    %52 = vector.broadcast %19 : vector<1x128xf32> to vector<8x128xf32>
    %53 = arith.addf %51, %52 : vector<8x128xf32>
    %c0_24 = arith.constant 0 : index
    %c0_25 = arith.constant 0 : index
    %54 = vector.load %arg5[%c0_24, %c0_25] : memref<32x128xf32, #tpu.memory_space<vmem>>, vector<32x128xf32>
    %cst_26 = arith.constant dense<0.000000e+00> : vector<8x128xf32>
    %55 = tpu.matmul %20, %54, %cst_26 {dimension_numbers = #tpu.dot_dimension_numbers<[1], [0], [0], [1], [0, 0, 1, 1], [], []>} : vector<8x32xf32>, vector<32x128xf32>, vector<8x128xf32> -> vector<8x128xf32>
    %56 = arith.addf %53, %55 : vector<8x128xf32>
    %57 = math.tanh %56 : vector<8x128xf32>
    %58 = vector.broadcast %15 : vector<1x128xf32> to vector<8x128xf32>
    %59 = arith.mulf %58, %57 : vector<8x128xf32>
    %60 = vector.broadcast %18 : vector<1x128xf32> to vector<8x128xf32>
    %61 = arith.addf %59, %60 : vector<8x128xf32>
    %62 = vector.extract_strided_slice %61 {offsets = [0, 0], sizes = [8, 32], strides = [1, 1]} : vector<8x128xf32> to vector<8x32xf32>
    %63 = vector.extract_strided_slice %61 {offsets = [0, 32], sizes = [8, 32], strides = [1, 1]} : vector<8x128xf32> to vector<8x32xf32>
    %64 = vector.extract_strided_slice %61 {offsets = [0, 64], sizes = [8, 32], strides = [1, 1]} : vector<8x128xf32> to vector<8x32xf32>
    %65 = vector.extract_strided_slice %61 {offsets = [0, 96], sizes = [8, 32], strides = [1, 1]} : vector<8x128xf32> to vector<8x32xf32>
    %66 = arith.mulf %63, %20 : vector<8x32xf32>
    %67 = arith.mulf %62, %64 : vector<8x32xf32>
    %68 = arith.addf %66, %67 : vector<8x32xf32>
    %69 = math.tanh %68 : vector<8x32xf32>
    %70 = arith.mulf %65, %69 : vector<8x32xf32>
    %c0_i32_27 = arith.constant 0 : i32
    %71 = arith.cmpi sge, %49, %c0_i32_27 : i32
    %c8_i32_28 = arith.constant 8 : i32
    %72 = arith.cmpi slt, %49, %c8_i32_28 : i32
    %73 = arith.andi %71, %72 : i1
    %74 = arith.select %73, %70, %20 : vector<8x32xf32>
    %75 = arith.select %73, %68, %20 : vector<8x32xf32>
    %c0_i32_29 = arith.constant 0 : i32
    %76 = arith.maxsi %49, %c0_i32_29 : i32
    %c8_i32_30 = arith.constant 8 : i32
    %77 = arith.muli %76, %c8_i32_30 : i32
    %78 = tpu.assume_multiple %77, 8 : i32
    %79 = arith.index_cast %78 : i32 to index
    %c0_31 = arith.constant 0 : index
    %80 = vector.load %arg11[%79, %c0_31] : memref<64x32xf32, #tpu.memory_space<vmem>>, vector<8x32xf32>
    tpu.vector_store %arg11[%79, %c0_31], %74 {strides = array<i32>} : memref<64x32xf32, #tpu.memory_space<vmem>>, vector<8x32xf32>,
    %c1_i32_32 = arith.constant 1 : i32
    %c0_i32_33 = arith.constant 0 : i32
    %81 = arith.subi %c1_i32_32, %c0_i32_33 : i32
    %c7_i32_34 = arith.constant 7 : i32
    %82 = arith.minsi %c1_i32_32, %c7_i32_34 : i32
    %c8_i32_35 = arith.constant 8 : i32
    %83 = arith.muli %82, %c8_i32_35 : i32
    %84 = tpu.assume_multiple %83, 8 : i32
    %85 = arith.index_cast %84 : i32 to index
    %c0_36 = arith.constant 0 : index
    %86 = vector.load %arg10[%85, %c0_36] : memref<64x128xf32, #tpu.memory_space<vmem>>, vector<8x128xf32>
    %c0_37 = arith.constant 0 : index
    %c0_38 = arith.constant 0 : index
    %87 = vector.load %arg2[%c0_37, %c0_38] : memref<32x128xf32, #tpu.memory_space<vmem>>, vector<32x128xf32>
    %cst_39 = arith.constant dense<0.000000e+00> : vector<8x128xf32>
    %88 = tpu.matmul %47, %87, %cst_39 {dimension_numbers = #tpu.dot_dimension_numbers<[1], [0], [0], [1], [0, 0, 1, 1], [], []>} : vector<8x32xf32>, vector<32x128xf32>, vector<8x128xf32> -> vector<8x128xf32>
    %89 = arith.addf %86, %88 : vector<8x128xf32>
    %90 = math.tanh %89 : vector<8x128xf32>
    %91 = vector.broadcast %15 : vector<1x128xf32> to vector<8x128xf32>
    %92 = arith.mulf %91, %90 : vector<8x128xf32>
    %93 = vector.broadcast %18 : vector<1x128xf32> to vector<8x128xf32>
    %94 = arith.addf %92, %93 : vector<8x128xf32>
    %95 = vector.extract_strided_slice %94 {offsets = [0, 0], sizes = [8, 32], strides = [1, 1]} : vector<8x128xf32> to vector<8x32xf32>
    %96 = vector.extract_strided_slice %94 {offsets = [0, 32], sizes = [8, 32], strides = [1, 1]} : vector<8x128xf32> to vector<8x32xf32>
    %97 = vector.extract_strided_slice %94 {offsets = [0, 64], sizes = [8, 32], strides = [1, 1]} : vector<8x128xf32> to vector<8x32xf32>
    %98 = vector.extract_strided_slice %94 {offsets = [0, 96], sizes = [8, 32], strides = [1, 1]} : vector<8x128xf32> to vector<8x32xf32>
    %99 = arith.mulf %96, %48 : vector<8x32xf32>
    %100 = arith.mulf %95, %97 : vector<8x32xf32>
    %101 = arith.addf %99, %100 : vector<8x32xf32>
    %102 = math.tanh %101 : vector<8x32xf32>
    %103 = arith.mulf %98, %102 : vector<8x32xf32>
    %c0_i32_40 = arith.constant 0 : i32
    %104 = arith.cmpi sge, %81, %c0_i32_40 : i32
    %c8_i32_41 = arith.constant 8 : i32
    %105 = arith.cmpi slt, %81, %c8_i32_41 : i32
    %106 = arith.andi %104, %105 : i1
    %107 = arith.select %106, %103, %47 : vector<8x32xf32>
    %108 = arith.select %106, %101, %48 : vector<8x32xf32>
    %c1_i32_42 = arith.constant 1 : i32
    %109 = arith.subi %c1_i32_32, %c1_i32_42 : i32
    %c0_43 = arith.constant 0 : index
    %c0_44 = arith.constant 0 : index
    %110 = vector.load %arg4[%c0_43, %c0_44] : memref<32x128xf32, #tpu.memory_space<vmem>>, vector<32x128xf32>
    %cst_45 = arith.constant dense<0.000000e+00> : vector<8x128xf32>
    %111 = tpu.matmul %47, %110, %cst_45 {dimension_numbers = #tpu.dot_dimension_numbers<[1], [0], [0], [1], [0, 0, 1, 1], [], []>} : vector<8x32xf32>, vector<32x128xf32>, vector<8x128xf32> -> vector<8x128xf32>
    %112 = vector.broadcast %19 : vector<1x128xf32> to vector<8x128xf32>
    %113 = arith.addf %111, %112 : vector<8x128xf32>
    %c0_46 = arith.constant 0 : index
    %c0_47 = arith.constant 0 : index
    %114 = vector.load %arg5[%c0_46, %c0_47] : memref<32x128xf32, #tpu.memory_space<vmem>>, vector<32x128xf32>
    %cst_48 = arith.constant dense<0.000000e+00> : vector<8x128xf32>
    %115 = tpu.matmul %74, %114, %cst_48 {dimension_numbers = #tpu.dot_dimension_numbers<[1], [0], [0], [1], [0, 0, 1, 1], [], []>} : vector<8x32xf32>, vector<32x128xf32>, vector<8x128xf32> -> vector<8x128xf32>
    %116 = arith.addf %113, %115 : vector<8x128xf32>
    %117 = math.tanh %116 : vector<8x128xf32>
    %118 = vector.broadcast %15 : vector<1x128xf32> to vector<8x128xf32>
    %119 = arith.mulf %118, %117 : vector<8x128xf32>
    %120 = vector.broadcast %18 : vector<1x128xf32> to vector<8x128xf32>
    %121 = arith.addf %119, %120 : vector<8x128xf32>
    %122 = vector.extract_strided_slice %121 {offsets = [0, 0], sizes = [8, 32], strides = [1, 1]} : vector<8x128xf32> to vector<8x32xf32>
    %123 = vector.extract_strided_slice %121 {offsets = [0, 32], sizes = [8, 32], strides = [1, 1]} : vector<8x128xf32> to vector<8x32xf32>
    %124 = vector.extract_strided_slice %121 {offsets = [0, 64], sizes = [8, 32], strides = [1, 1]} : vector<8x128xf32> to vector<8x32xf32>
    %125 = vector.extract_strided_slice %121 {offsets = [0, 96], sizes = [8, 32], strides = [1, 1]} : vector<8x128xf32> to vector<8x32xf32>
    %126 = arith.mulf %123, %75 : vector<8x32xf32>
    %127 = arith.mulf %122, %124 : vector<8x32xf32>
    %128 = arith.addf %126, %127 : vector<8x32xf32>
    %129 = math.tanh %128 : vector<8x32xf32>
    %130 = arith.mulf %125, %129 : vector<8x32xf32>
    %c0_i32_49 = arith.constant 0 : i32
    %131 = arith.cmpi sge, %109, %c0_i32_49 : i32
    %c8_i32_50 = arith.constant 8 : i32
    %132 = arith.cmpi slt, %109, %c8_i32_50 : i32
    %133 = arith.andi %131, %132 : i1
    %134 = arith.select %133, %130, %74 : vector<8x32xf32>
    %135 = arith.select %133, %128, %75 : vector<8x32xf32>
    %c0_i32_51 = arith.constant 0 : i32
    %136 = arith.maxsi %109, %c0_i32_51 : i32
    %c8_i32_52 = arith.constant 8 : i32
    %137 = arith.muli %136, %c8_i32_52 : i32
    %138 = tpu.assume_multiple %137, 8 : i32
    %139 = arith.index_cast %138 : i32 to index
    %c0_53 = arith.constant 0 : index
    %140 = vector.load %arg11[%139, %c0_53] : memref<64x32xf32, #tpu.memory_space<vmem>>, vector<8x32xf32>
    tpu.vector_store %arg11[%139, %c0_53], %134 {strides = array<i32>} : memref<64x32xf32, #tpu.memory_space<vmem>>, vector<8x32xf32>,
    %c2_i32 = arith.constant 2 : i32
    %c0_i32_54 = arith.constant 0 : i32
    %141 = arith.subi %c2_i32, %c0_i32_54 : i32
    %c7_i32_55 = arith.constant 7 : i32
    %142 = arith.minsi %c2_i32, %c7_i32_55 : i32
    %c8_i32_56 = arith.constant 8 : i32
    %143 = arith.muli %142, %c8_i32_56 : i32
    %144 = tpu.assume_multiple %143, 8 : i32
    %145 = arith.index_cast %144 : i32 to index
    %c0_57 = arith.constant 0 : index
    %146 = vector.load %arg10[%145, %c0_57] : memref<64x128xf32, #tpu.memory_space<vmem>>, vector<8x128xf32>
    %c0_58 = arith.constant 0 : index
    %c0_59 = arith.constant 0 : index
    %147 = vector.load %arg2[%c0_58, %c0_59] : memref<32x128xf32, #tpu.memory_space<vmem>>, vector<32x128xf32>
    %cst_60 = arith.constant dense<0.000000e+00> : vector<8x128xf32>
    %148 = tpu.matmul %107, %147, %cst_60 {dimension_numbers = #tpu.dot_dimension_numbers<[1], [0], [0], [1], [0, 0, 1, 1], [], []>} : vector<8x32xf32>, vector<32x128xf32>, vector<8x128xf32> -> vector<8x128xf32>
    %149 = arith.addf %146, %148 : vector<8x128xf32>
    %150 = math.tanh %149 : vector<8x128xf32>
    %151 = vector.broadcast %15 : vector<1x128xf32> to vector<8x128xf32>
    %152 = arith.mulf %151, %150 : vector<8x128xf32>
    %153 = vector.broadcast %18 : vector<1x128xf32> to vector<8x128xf32>
    %154 = arith.addf %152, %153 : vector<8x128xf32>
    %155 = vector.extract_strided_slice %154 {offsets = [0, 0], sizes = [8, 32], strides = [1, 1]} : vector<8x128xf32> to vector<8x32xf32>
    %156 = vector.extract_strided_slice %154 {offsets = [0, 32], sizes = [8, 32], strides = [1, 1]} : vector<8x128xf32> to vector<8x32xf32>
    %157 = vector.extract_strided_slice %154 {offsets = [0, 64], sizes = [8, 32], strides = [1, 1]} : vector<8x128xf32> to vector<8x32xf32>
    %158 = vector.extract_strided_slice %154 {offsets = [0, 96], sizes = [8, 32], strides = [1, 1]} : vector<8x128xf32> to vector<8x32xf32>
    %159 = arith.mulf %156, %108 : vector<8x32xf32>
    %160 = arith.mulf %155, %157 : vector<8x32xf32>
    %161 = arith.addf %159, %160 : vector<8x32xf32>
    %162 = math.tanh %161 : vector<8x32xf32>
    %163 = arith.mulf %158, %162 : vector<8x32xf32>
    %c0_i32_61 = arith.constant 0 : i32
    %164 = arith.cmpi sge, %141, %c0_i32_61 : i32
    %c8_i32_62 = arith.constant 8 : i32
    %165 = arith.cmpi slt, %141, %c8_i32_62 : i32
    %166 = arith.andi %164, %165 : i1
    %167 = arith.select %166, %163, %107 : vector<8x32xf32>
    %168 = arith.select %166, %161, %108 : vector<8x32xf32>
    %c1_i32_63 = arith.constant 1 : i32
    %169 = arith.subi %c2_i32, %c1_i32_63 : i32
    %c0_64 = arith.constant 0 : index
    %c0_65 = arith.constant 0 : index
    %170 = vector.load %arg4[%c0_64, %c0_65] : memref<32x128xf32, #tpu.memory_space<vmem>>, vector<32x128xf32>
    %cst_66 = arith.constant dense<0.000000e+00> : vector<8x128xf32>
    %171 = tpu.matmul %107, %170, %cst_66 {dimension_numbers = #tpu.dot_dimension_numbers<[1], [0], [0], [1], [0, 0, 1, 1], [], []>} : vector<8x32xf32>, vector<32x128xf32>, vector<8x128xf32> -> vector<8x128xf32>
    %172 = vector.broadcast %19 : vector<1x128xf32> to vector<8x128xf32>
    %173 = arith.addf %171, %172 : vector<8x128xf32>
    %c0_67 = arith.constant 0 : index
    %c0_68 = arith.constant 0 : index
    %174 = vector.load %arg5[%c0_67, %c0_68] : memref<32x128xf32, #tpu.memory_space<vmem>>, vector<32x128xf32>
    %cst_69 = arith.constant dense<0.000000e+00> : vector<8x128xf32>
    %175 = tpu.matmul %134, %174, %cst_69 {dimension_numbers = #tpu.dot_dimension_numbers<[1], [0], [0], [1], [0, 0, 1, 1], [], []>} : vector<8x32xf32>, vector<32x128xf32>, vector<8x128xf32> -> vector<8x128xf32>
    %176 = arith.addf %173, %175 : vector<8x128xf32>
    %177 = math.tanh %176 : vector<8x128xf32>
    %178 = vector.broadcast %15 : vector<1x128xf32> to vector<8x128xf32>
    %179 = arith.mulf %178, %177 : vector<8x128xf32>
    %180 = vector.broadcast %18 : vector<1x128xf32> to vector<8x128xf32>
    %181 = arith.addf %179, %180 : vector<8x128xf32>
    %182 = vector.extract_strided_slice %181 {offsets = [0, 0], sizes = [8, 32], strides = [1, 1]} : vector<8x128xf32> to vector<8x32xf32>
    %183 = vector.extract_strided_slice %181 {offsets = [0, 32], sizes = [8, 32], strides = [1, 1]} : vector<8x128xf32> to vector<8x32xf32>
    %184 = vector.extract_strided_slice %181 {offsets = [0, 64], sizes = [8, 32], strides = [1, 1]} : vector<8x128xf32> to vector<8x32xf32>
    %185 = vector.extract_strided_slice %181 {offsets = [0, 96], sizes = [8, 32], strides = [1, 1]} : vector<8x128xf32> to vector<8x32xf32>
    %186 = arith.mulf %183, %135 : vector<8x32xf32>
    %187 = arith.mulf %182, %184 : vector<8x32xf32>
    %188 = arith.addf %186, %187 : vector<8x32xf32>
    %189 = math.tanh %188 : vector<8x32xf32>
    %190 = arith.mulf %185, %189 : vector<8x32xf32>
    %c0_i32_70 = arith.constant 0 : i32
    %191 = arith.cmpi sge, %169, %c0_i32_70 : i32
    %c8_i32_71 = arith.constant 8 : i32
    %192 = arith.cmpi slt, %169, %c8_i32_71 : i32
    %193 = arith.andi %191, %192 : i1
    %194 = arith.select %193, %190, %134 : vector<8x32xf32>
    %195 = arith.select %193, %188, %135 : vector<8x32xf32>
    %c0_i32_72 = arith.constant 0 : i32
    %196 = arith.maxsi %169, %c0_i32_72 : i32
    %c8_i32_73 = arith.constant 8 : i32
    %197 = arith.muli %196, %c8_i32_73 : i32
    %198 = tpu.assume_multiple %197, 8 : i32
    %199 = arith.index_cast %198 : i32 to index
    %c0_74 = arith.constant 0 : index
    %200 = vector.load %arg11[%199, %c0_74] : memref<64x32xf32, #tpu.memory_space<vmem>>, vector<8x32xf32>
    tpu.vector_store %arg11[%199, %c0_74], %194 {strides = array<i32>} : memref<64x32xf32, #tpu.memory_space<vmem>>, vector<8x32xf32>,
    %c3_i32 = arith.constant 3 : i32
    %c0_i32_75 = arith.constant 0 : i32
    %201 = arith.subi %c3_i32, %c0_i32_75 : i32
    %c7_i32_76 = arith.constant 7 : i32
    %202 = arith.minsi %c3_i32, %c7_i32_76 : i32
    %c8_i32_77 = arith.constant 8 : i32
    %203 = arith.muli %202, %c8_i32_77 : i32
    %204 = tpu.assume_multiple %203, 8 : i32
    %205 = arith.index_cast %204 : i32 to index
    %c0_78 = arith.constant 0 : index
    %206 = vector.load %arg10[%205, %c0_78] : memref<64x128xf32, #tpu.memory_space<vmem>>, vector<8x128xf32>
    %c0_79 = arith.constant 0 : index
    %c0_80 = arith.constant 0 : index
    %207 = vector.load %arg2[%c0_79, %c0_80] : memref<32x128xf32, #tpu.memory_space<vmem>>, vector<32x128xf32>
    %cst_81 = arith.constant dense<0.000000e+00> : vector<8x128xf32>
    %208 = tpu.matmul %167, %207, %cst_81 {dimension_numbers = #tpu.dot_dimension_numbers<[1], [0], [0], [1], [0, 0, 1, 1], [], []>} : vector<8x32xf32>, vector<32x128xf32>, vector<8x128xf32> -> vector<8x128xf32>
    %209 = arith.addf %206, %208 : vector<8x128xf32>
    %210 = math.tanh %209 : vector<8x128xf32>
    %211 = vector.broadcast %15 : vector<1x128xf32> to vector<8x128xf32>
    %212 = arith.mulf %211, %210 : vector<8x128xf32>
    %213 = vector.broadcast %18 : vector<1x128xf32> to vector<8x128xf32>
    %214 = arith.addf %212, %213 : vector<8x128xf32>
    %215 = vector.extract_strided_slice %214 {offsets = [0, 0], sizes = [8, 32], strides = [1, 1]} : vector<8x128xf32> to vector<8x32xf32>
    %216 = vector.extract_strided_slice %214 {offsets = [0, 32], sizes = [8, 32], strides = [1, 1]} : vector<8x128xf32> to vector<8x32xf32>
    %217 = vector.extract_strided_slice %214 {offsets = [0, 64], sizes = [8, 32], strides = [1, 1]} : vector<8x128xf32> to vector<8x32xf32>
    %218 = vector.extract_strided_slice %214 {offsets = [0, 96], sizes = [8, 32], strides = [1, 1]} : vector<8x128xf32> to vector<8x32xf32>
    %219 = arith.mulf %216, %168 : vector<8x32xf32>
    %220 = arith.mulf %215, %217 : vector<8x32xf32>
    %221 = arith.addf %219, %220 : vector<8x32xf32>
    %222 = math.tanh %221 : vector<8x32xf32>
    %223 = arith.mulf %218, %222 : vector<8x32xf32>
    %c0_i32_82 = arith.constant 0 : i32
    %224 = arith.cmpi sge, %201, %c0_i32_82 : i32
    %c8_i32_83 = arith.constant 8 : i32
    %225 = arith.cmpi slt, %201, %c8_i32_83 : i32
    %226 = arith.andi %224, %225 : i1
    %227 = arith.select %226, %223, %167 : vector<8x32xf32>
    %228 = arith.select %226, %221, %168 : vector<8x32xf32>
    %c1_i32_84 = arith.constant 1 : i32
    %229 = arith.subi %c3_i32, %c1_i32_84 : i32
    %c0_85 = arith.constant 0 : index
    %c0_86 = arith.constant 0 : index
    %230 = vector.load %arg4[%c0_85, %c0_86] : memref<32x128xf32, #tpu.memory_space<vmem>>, vector<32x128xf32>
    %cst_87 = arith.constant dense<0.000000e+00> : vector<8x128xf32>
    %231 = tpu.matmul %167, %230, %cst_87 {dimension_numbers = #tpu.dot_dimension_numbers<[1], [0], [0], [1], [0, 0, 1, 1], [], []>} : vector<8x32xf32>, vector<32x128xf32>, vector<8x128xf32> -> vector<8x128xf32>
    %232 = vector.broadcast %19 : vector<1x128xf32> to vector<8x128xf32>
    %233 = arith.addf %231, %232 : vector<8x128xf32>
    %c0_88 = arith.constant 0 : index
    %c0_89 = arith.constant 0 : index
    %234 = vector.load %arg5[%c0_88, %c0_89] : memref<32x128xf32, #tpu.memory_space<vmem>>, vector<32x128xf32>
    %cst_90 = arith.constant dense<0.000000e+00> : vector<8x128xf32>
    %235 = tpu.matmul %194, %234, %cst_90 {dimension_numbers = #tpu.dot_dimension_numbers<[1], [0], [0], [1], [0, 0, 1, 1], [], []>} : vector<8x32xf32>, vector<32x128xf32>, vector<8x128xf32> -> vector<8x128xf32>
    %236 = arith.addf %233, %235 : vector<8x128xf32>
    %237 = math.tanh %236 : vector<8x128xf32>
    %238 = vector.broadcast %15 : vector<1x128xf32> to vector<8x128xf32>
    %239 = arith.mulf %238, %237 : vector<8x128xf32>
    %240 = vector.broadcast %18 : vector<1x128xf32> to vector<8x128xf32>
    %241 = arith.addf %239, %240 : vector<8x128xf32>
    %242 = vector.extract_strided_slice %241 {offsets = [0, 0], sizes = [8, 32], strides = [1, 1]} : vector<8x128xf32> to vector<8x32xf32>
    %243 = vector.extract_strided_slice %241 {offsets = [0, 32], sizes = [8, 32], strides = [1, 1]} : vector<8x128xf32> to vector<8x32xf32>
    %244 = vector.extract_strided_slice %241 {offsets = [0, 64], sizes = [8, 32], strides = [1, 1]} : vector<8x128xf32> to vector<8x32xf32>
    %245 = vector.extract_strided_slice %241 {offsets = [0, 96], sizes = [8, 32], strides = [1, 1]} : vector<8x128xf32> to vector<8x32xf32>
    %246 = arith.mulf %243, %195 : vector<8x32xf32>
    %247 = arith.mulf %242, %244 : vector<8x32xf32>
    %248 = arith.addf %246, %247 : vector<8x32xf32>
    %249 = math.tanh %248 : vector<8x32xf32>
    %250 = arith.mulf %245, %249 : vector<8x32xf32>
    %c0_i32_91 = arith.constant 0 : i32
    %251 = arith.cmpi sge, %229, %c0_i32_91 : i32
    %c8_i32_92 = arith.constant 8 : i32
    %252 = arith.cmpi slt, %229, %c8_i32_92 : i32
    %253 = arith.andi %251, %252 : i1
    %254 = arith.select %253, %250, %194 : vector<8x32xf32>
    %255 = arith.select %253, %248, %195 : vector<8x32xf32>
    %c0_i32_93 = arith.constant 0 : i32
    %256 = arith.maxsi %229, %c0_i32_93 : i32
    %c8_i32_94 = arith.constant 8 : i32
    %257 = arith.muli %256, %c8_i32_94 : i32
    %258 = tpu.assume_multiple %257, 8 : i32
    %259 = arith.index_cast %258 : i32 to index
    %c0_95 = arith.constant 0 : index
    %260 = vector.load %arg11[%259, %c0_95] : memref<64x32xf32, #tpu.memory_space<vmem>>, vector<8x32xf32>
    tpu.vector_store %arg11[%259, %c0_95], %254 {strides = array<i32>} : memref<64x32xf32, #tpu.memory_space<vmem>>, vector<8x32xf32>,
    %c4_i32 = arith.constant 4 : i32
    %c0_i32_96 = arith.constant 0 : i32
    %261 = arith.subi %c4_i32, %c0_i32_96 : i32
    %c7_i32_97 = arith.constant 7 : i32
    %262 = arith.minsi %c4_i32, %c7_i32_97 : i32
    %c8_i32_98 = arith.constant 8 : i32
    %263 = arith.muli %262, %c8_i32_98 : i32
    %264 = tpu.assume_multiple %263, 8 : i32
    %265 = arith.index_cast %264 : i32 to index
    %c0_99 = arith.constant 0 : index
    %266 = vector.load %arg10[%265, %c0_99] : memref<64x128xf32, #tpu.memory_space<vmem>>, vector<8x128xf32>
    %c0_100 = arith.constant 0 : index
    %c0_101 = arith.constant 0 : index
    %267 = vector.load %arg2[%c0_100, %c0_101] : memref<32x128xf32, #tpu.memory_space<vmem>>, vector<32x128xf32>
    %cst_102 = arith.constant dense<0.000000e+00> : vector<8x128xf32>
    %268 = tpu.matmul %227, %267, %cst_102 {dimension_numbers = #tpu.dot_dimension_numbers<[1], [0], [0], [1], [0, 0, 1, 1], [], []>} : vector<8x32xf32>, vector<32x128xf32>, vector<8x128xf32> -> vector<8x128xf32>
    %269 = arith.addf %266, %268 : vector<8x128xf32>
    %270 = math.tanh %269 : vector<8x128xf32>
    %271 = vector.broadcast %15 : vector<1x128xf32> to vector<8x128xf32>
    %272 = arith.mulf %271, %270 : vector<8x128xf32>
    %273 = vector.broadcast %18 : vector<1x128xf32> to vector<8x128xf32>
    %274 = arith.addf %272, %273 : vector<8x128xf32>
    %275 = vector.extract_strided_slice %274 {offsets = [0, 0], sizes = [8, 32], strides = [1, 1]} : vector<8x128xf32> to vector<8x32xf32>
    %276 = vector.extract_strided_slice %274 {offsets = [0, 32], sizes = [8, 32], strides = [1, 1]} : vector<8x128xf32> to vector<8x32xf32>
    %277 = vector.extract_strided_slice %274 {offsets = [0, 64], sizes = [8, 32], strides = [1, 1]} : vector<8x128xf32> to vector<8x32xf32>
    %278 = vector.extract_strided_slice %274 {offsets = [0, 96], sizes = [8, 32], strides = [1, 1]} : vector<8x128xf32> to vector<8x32xf32>
    %279 = arith.mulf %276, %228 : vector<8x32xf32>
    %280 = arith.mulf %275, %277 : vector<8x32xf32>
    %281 = arith.addf %279, %280 : vector<8x32xf32>
    %282 = math.tanh %281 : vector<8x32xf32>
    %283 = arith.mulf %278, %282 : vector<8x32xf32>
    %c0_i32_103 = arith.constant 0 : i32
    %284 = arith.cmpi sge, %261, %c0_i32_103 : i32
    %c8_i32_104 = arith.constant 8 : i32
    %285 = arith.cmpi slt, %261, %c8_i32_104 : i32
    %286 = arith.andi %284, %285 : i1
    %287 = arith.select %286, %283, %227 : vector<8x32xf32>
    %288 = arith.select %286, %281, %228 : vector<8x32xf32>
    %c1_i32_105 = arith.constant 1 : i32
    %289 = arith.subi %c4_i32, %c1_i32_105 : i32
    %c0_106 = arith.constant 0 : index
    %c0_107 = arith.constant 0 : index
    %290 = vector.load %arg4[%c0_106, %c0_107] : memref<32x128xf32, #tpu.memory_space<vmem>>, vector<32x128xf32>
    %cst_108 = arith.constant dense<0.000000e+00> : vector<8x128xf32>
    %291 = tpu.matmul %227, %290, %cst_108 {dimension_numbers = #tpu.dot_dimension_numbers<[1], [0], [0], [1], [0, 0, 1, 1], [], []>} : vector<8x32xf32>, vector<32x128xf32>, vector<8x128xf32> -> vector<8x128xf32>
    %292 = vector.broadcast %19 : vector<1x128xf32> to vector<8x128xf32>
    %293 = arith.addf %291, %292 : vector<8x128xf32>
    %c0_109 = arith.constant 0 : index
    %c0_110 = arith.constant 0 : index
    %294 = vector.load %arg5[%c0_109, %c0_110] : memref<32x128xf32, #tpu.memory_space<vmem>>, vector<32x128xf32>
    %cst_111 = arith.constant dense<0.000000e+00> : vector<8x128xf32>
    %295 = tpu.matmul %254, %294, %cst_111 {dimension_numbers = #tpu.dot_dimension_numbers<[1], [0], [0], [1], [0, 0, 1, 1], [], []>} : vector<8x32xf32>, vector<32x128xf32>, vector<8x128xf32> -> vector<8x128xf32>
    %296 = arith.addf %293, %295 : vector<8x128xf32>
    %297 = math.tanh %296 : vector<8x128xf32>
    %298 = vector.broadcast %15 : vector<1x128xf32> to vector<8x128xf32>
    %299 = arith.mulf %298, %297 : vector<8x128xf32>
    %300 = vector.broadcast %18 : vector<1x128xf32> to vector<8x128xf32>
    %301 = arith.addf %299, %300 : vector<8x128xf32>
    %302 = vector.extract_strided_slice %301 {offsets = [0, 0], sizes = [8, 32], strides = [1, 1]} : vector<8x128xf32> to vector<8x32xf32>
    %303 = vector.extract_strided_slice %301 {offsets = [0, 32], sizes = [8, 32], strides = [1, 1]} : vector<8x128xf32> to vector<8x32xf32>
    %304 = vector.extract_strided_slice %301 {offsets = [0, 64], sizes = [8, 32], strides = [1, 1]} : vector<8x128xf32> to vector<8x32xf32>
    %305 = vector.extract_strided_slice %301 {offsets = [0, 96], sizes = [8, 32], strides = [1, 1]} : vector<8x128xf32> to vector<8x32xf32>
    %306 = arith.mulf %303, %255 : vector<8x32xf32>
    %307 = arith.mulf %302, %304 : vector<8x32xf32>
    %308 = arith.addf %306, %307 : vector<8x32xf32>
    %309 = math.tanh %308 : vector<8x32xf32>
    %310 = arith.mulf %305, %309 : vector<8x32xf32>
    %c0_i32_112 = arith.constant 0 : i32
    %311 = arith.cmpi sge, %289, %c0_i32_112 : i32
    %c8_i32_113 = arith.constant 8 : i32
    %312 = arith.cmpi slt, %289, %c8_i32_113 : i32
    %313 = arith.andi %311, %312 : i1
    %314 = arith.select %313, %310, %254 : vector<8x32xf32>
    %315 = arith.select %313, %308, %255 : vector<8x32xf32>
    %c0_i32_114 = arith.constant 0 : i32
    %316 = arith.maxsi %289, %c0_i32_114 : i32
    %c8_i32_115 = arith.constant 8 : i32
    %317 = arith.muli %316, %c8_i32_115 : i32
    %318 = tpu.assume_multiple %317, 8 : i32
    %319 = arith.index_cast %318 : i32 to index
    %c0_116 = arith.constant 0 : index
    %320 = vector.load %arg11[%319, %c0_116] : memref<64x32xf32, #tpu.memory_space<vmem>>, vector<8x32xf32>
    tpu.vector_store %arg11[%319, %c0_116], %314 {strides = array<i32>} : memref<64x32xf32, #tpu.memory_space<vmem>>, vector<8x32xf32>,
    %c5_i32 = arith.constant 5 : i32
    %c0_i32_117 = arith.constant 0 : i32
    %321 = arith.subi %c5_i32, %c0_i32_117 : i32
    %c7_i32_118 = arith.constant 7 : i32
    %322 = arith.minsi %c5_i32, %c7_i32_118 : i32
    %c8_i32_119 = arith.constant 8 : i32
    %323 = arith.muli %322, %c8_i32_119 : i32
    %324 = tpu.assume_multiple %323, 8 : i32
    %325 = arith.index_cast %324 : i32 to index
    %c0_120 = arith.constant 0 : index
    %326 = vector.load %arg10[%325, %c0_120] : memref<64x128xf32, #tpu.memory_space<vmem>>, vector<8x128xf32>
    %c0_121 = arith.constant 0 : index
    %c0_122 = arith.constant 0 : index
    %327 = vector.load %arg2[%c0_121, %c0_122] : memref<32x128xf32, #tpu.memory_space<vmem>>, vector<32x128xf32>
    %cst_123 = arith.constant dense<0.000000e+00> : vector<8x128xf32>
    %328 = tpu.matmul %287, %327, %cst_123 {dimension_numbers = #tpu.dot_dimension_numbers<[1], [0], [0], [1], [0, 0, 1, 1], [], []>} : vector<8x32xf32>, vector<32x128xf32>, vector<8x128xf32> -> vector<8x128xf32>
    %329 = arith.addf %326, %328 : vector<8x128xf32>
    %330 = math.tanh %329 : vector<8x128xf32>
    %331 = vector.broadcast %15 : vector<1x128xf32> to vector<8x128xf32>
    %332 = arith.mulf %331, %330 : vector<8x128xf32>
    %333 = vector.broadcast %18 : vector<1x128xf32> to vector<8x128xf32>
    %334 = arith.addf %332, %333 : vector<8x128xf32>
    %335 = vector.extract_strided_slice %334 {offsets = [0, 0], sizes = [8, 32], strides = [1, 1]} : vector<8x128xf32> to vector<8x32xf32>
    %336 = vector.extract_strided_slice %334 {offsets = [0, 32], sizes = [8, 32], strides = [1, 1]} : vector<8x128xf32> to vector<8x32xf32>
    %337 = vector.extract_strided_slice %334 {offsets = [0, 64], sizes = [8, 32], strides = [1, 1]} : vector<8x128xf32> to vector<8x32xf32>
    %338 = vector.extract_strided_slice %334 {offsets = [0, 96], sizes = [8, 32], strides = [1, 1]} : vector<8x128xf32> to vector<8x32xf32>
    %339 = arith.mulf %336, %288 : vector<8x32xf32>
    %340 = arith.mulf %335, %337 : vector<8x32xf32>
    %341 = arith.addf %339, %340 : vector<8x32xf32>
    %342 = math.tanh %341 : vector<8x32xf32>
    %343 = arith.mulf %338, %342 : vector<8x32xf32>
    %c0_i32_124 = arith.constant 0 : i32
    %344 = arith.cmpi sge, %321, %c0_i32_124 : i32
    %c8_i32_125 = arith.constant 8 : i32
    %345 = arith.cmpi slt, %321, %c8_i32_125 : i32
    %346 = arith.andi %344, %345 : i1
    %347 = arith.select %346, %343, %287 : vector<8x32xf32>
    %348 = arith.select %346, %341, %288 : vector<8x32xf32>
    %c1_i32_126 = arith.constant 1 : i32
    %349 = arith.subi %c5_i32, %c1_i32_126 : i32
    %c0_127 = arith.constant 0 : index
    %c0_128 = arith.constant 0 : index
    %350 = vector.load %arg4[%c0_127, %c0_128] : memref<32x128xf32, #tpu.memory_space<vmem>>, vector<32x128xf32>
    %cst_129 = arith.constant dense<0.000000e+00> : vector<8x128xf32>
    %351 = tpu.matmul %287, %350, %cst_129 {dimension_numbers = #tpu.dot_dimension_numbers<[1], [0], [0], [1], [0, 0, 1, 1], [], []>} : vector<8x32xf32>, vector<32x128xf32>, vector<8x128xf32> -> vector<8x128xf32>
    %352 = vector.broadcast %19 : vector<1x128xf32> to vector<8x128xf32>
    %353 = arith.addf %351, %352 : vector<8x128xf32>
    %c0_130 = arith.constant 0 : index
    %c0_131 = arith.constant 0 : index
    %354 = vector.load %arg5[%c0_130, %c0_131] : memref<32x128xf32, #tpu.memory_space<vmem>>, vector<32x128xf32>
    %cst_132 = arith.constant dense<0.000000e+00> : vector<8x128xf32>
    %355 = tpu.matmul %314, %354, %cst_132 {dimension_numbers = #tpu.dot_dimension_numbers<[1], [0], [0], [1], [0, 0, 1, 1], [], []>} : vector<8x32xf32>, vector<32x128xf32>, vector<8x128xf32> -> vector<8x128xf32>
    %356 = arith.addf %353, %355 : vector<8x128xf32>
    %357 = math.tanh %356 : vector<8x128xf32>
    %358 = vector.broadcast %15 : vector<1x128xf32> to vector<8x128xf32>
    %359 = arith.mulf %358, %357 : vector<8x128xf32>
    %360 = vector.broadcast %18 : vector<1x128xf32> to vector<8x128xf32>
    %361 = arith.addf %359, %360 : vector<8x128xf32>
    %362 = vector.extract_strided_slice %361 {offsets = [0, 0], sizes = [8, 32], strides = [1, 1]} : vector<8x128xf32> to vector<8x32xf32>
    %363 = vector.extract_strided_slice %361 {offsets = [0, 32], sizes = [8, 32], strides = [1, 1]} : vector<8x128xf32> to vector<8x32xf32>
    %364 = vector.extract_strided_slice %361 {offsets = [0, 64], sizes = [8, 32], strides = [1, 1]} : vector<8x128xf32> to vector<8x32xf32>
    %365 = vector.extract_strided_slice %361 {offsets = [0, 96], sizes = [8, 32], strides = [1, 1]} : vector<8x128xf32> to vector<8x32xf32>
    %366 = arith.mulf %363, %315 : vector<8x32xf32>
    %367 = arith.mulf %362, %364 : vector<8x32xf32>
    %368 = arith.addf %366, %367 : vector<8x32xf32>
    %369 = math.tanh %368 : vector<8x32xf32>
    %370 = arith.mulf %365, %369 : vector<8x32xf32>
    %c0_i32_133 = arith.constant 0 : i32
    %371 = arith.cmpi sge, %349, %c0_i32_133 : i32
    %c8_i32_134 = arith.constant 8 : i32
    %372 = arith.cmpi slt, %349, %c8_i32_134 : i32
    %373 = arith.andi %371, %372 : i1
    %374 = arith.select %373, %370, %314 : vector<8x32xf32>
    %375 = arith.select %373, %368, %315 : vector<8x32xf32>
    %c0_i32_135 = arith.constant 0 : i32
    %376 = arith.maxsi %349, %c0_i32_135 : i32
    %c8_i32_136 = arith.constant 8 : i32
    %377 = arith.muli %376, %c8_i32_136 : i32
    %378 = tpu.assume_multiple %377, 8 : i32
    %379 = arith.index_cast %378 : i32 to index
    %c0_137 = arith.constant 0 : index
    %380 = vector.load %arg11[%379, %c0_137] : memref<64x32xf32, #tpu.memory_space<vmem>>, vector<8x32xf32>
    tpu.vector_store %arg11[%379, %c0_137], %374 {strides = array<i32>} : memref<64x32xf32, #tpu.memory_space<vmem>>, vector<8x32xf32>,
    %c6_i32 = arith.constant 6 : i32
    %c0_i32_138 = arith.constant 0 : i32
    %381 = arith.subi %c6_i32, %c0_i32_138 : i32
    %c7_i32_139 = arith.constant 7 : i32
    %382 = arith.minsi %c6_i32, %c7_i32_139 : i32
    %c8_i32_140 = arith.constant 8 : i32
    %383 = arith.muli %382, %c8_i32_140 : i32
    %384 = tpu.assume_multiple %383, 8 : i32
    %385 = arith.index_cast %384 : i32 to index
    %c0_141 = arith.constant 0 : index
    %386 = vector.load %arg10[%385, %c0_141] : memref<64x128xf32, #tpu.memory_space<vmem>>, vector<8x128xf32>
    %c0_142 = arith.constant 0 : index
    %c0_143 = arith.constant 0 : index
    %387 = vector.load %arg2[%c0_142, %c0_143] : memref<32x128xf32, #tpu.memory_space<vmem>>, vector<32x128xf32>
    %cst_144 = arith.constant dense<0.000000e+00> : vector<8x128xf32>
    %388 = tpu.matmul %347, %387, %cst_144 {dimension_numbers = #tpu.dot_dimension_numbers<[1], [0], [0], [1], [0, 0, 1, 1], [], []>} : vector<8x32xf32>, vector<32x128xf32>, vector<8x128xf32> -> vector<8x128xf32>
    %389 = arith.addf %386, %388 : vector<8x128xf32>
    %390 = math.tanh %389 : vector<8x128xf32>
    %391 = vector.broadcast %15 : vector<1x128xf32> to vector<8x128xf32>
    %392 = arith.mulf %391, %390 : vector<8x128xf32>
    %393 = vector.broadcast %18 : vector<1x128xf32> to vector<8x128xf32>
    %394 = arith.addf %392, %393 : vector<8x128xf32>
    %395 = vector.extract_strided_slice %394 {offsets = [0, 0], sizes = [8, 32], strides = [1, 1]} : vector<8x128xf32> to vector<8x32xf32>
    %396 = vector.extract_strided_slice %394 {offsets = [0, 32], sizes = [8, 32], strides = [1, 1]} : vector<8x128xf32> to vector<8x32xf32>
    %397 = vector.extract_strided_slice %394 {offsets = [0, 64], sizes = [8, 32], strides = [1, 1]} : vector<8x128xf32> to vector<8x32xf32>
    %398 = vector.extract_strided_slice %394 {offsets = [0, 96], sizes = [8, 32], strides = [1, 1]} : vector<8x128xf32> to vector<8x32xf32>
    %399 = arith.mulf %396, %348 : vector<8x32xf32>
    %400 = arith.mulf %395, %397 : vector<8x32xf32>
    %401 = arith.addf %399, %400 : vector<8x32xf32>
    %402 = math.tanh %401 : vector<8x32xf32>
    %403 = arith.mulf %398, %402 : vector<8x32xf32>
    %c0_i32_145 = arith.constant 0 : i32
    %404 = arith.cmpi sge, %381, %c0_i32_145 : i32
    %c8_i32_146 = arith.constant 8 : i32
    %405 = arith.cmpi slt, %381, %c8_i32_146 : i32
    %406 = arith.andi %404, %405 : i1
    %407 = arith.select %406, %403, %347 : vector<8x32xf32>
    %408 = arith.select %406, %401, %348 : vector<8x32xf32>
    %c1_i32_147 = arith.constant 1 : i32
    %409 = arith.subi %c6_i32, %c1_i32_147 : i32
    %c0_148 = arith.constant 0 : index
    %c0_149 = arith.constant 0 : index
    %410 = vector.load %arg4[%c0_148, %c0_149] : memref<32x128xf32, #tpu.memory_space<vmem>>, vector<32x128xf32>
    %cst_150 = arith.constant dense<0.000000e+00> : vector<8x128xf32>
    %411 = tpu.matmul %347, %410, %cst_150 {dimension_numbers = #tpu.dot_dimension_numbers<[1], [0], [0], [1], [0, 0, 1, 1], [], []>} : vector<8x32xf32>, vector<32x128xf32>, vector<8x128xf32> -> vector<8x128xf32>
    %412 = vector.broadcast %19 : vector<1x128xf32> to vector<8x128xf32>
    %413 = arith.addf %411, %412 : vector<8x128xf32>
    %c0_151 = arith.constant 0 : index
    %c0_152 = arith.constant 0 : index
    %414 = vector.load %arg5[%c0_151, %c0_152] : memref<32x128xf32, #tpu.memory_space<vmem>>, vector<32x128xf32>
    %cst_153 = arith.constant dense<0.000000e+00> : vector<8x128xf32>
    %415 = tpu.matmul %374, %414, %cst_153 {dimension_numbers = #tpu.dot_dimension_numbers<[1], [0], [0], [1], [0, 0, 1, 1], [], []>} : vector<8x32xf32>, vector<32x128xf32>, vector<8x128xf32> -> vector<8x128xf32>
    %416 = arith.addf %413, %415 : vector<8x128xf32>
    %417 = math.tanh %416 : vector<8x128xf32>
    %418 = vector.broadcast %15 : vector<1x128xf32> to vector<8x128xf32>
    %419 = arith.mulf %418, %417 : vector<8x128xf32>
    %420 = vector.broadcast %18 : vector<1x128xf32> to vector<8x128xf32>
    %421 = arith.addf %419, %420 : vector<8x128xf32>
    %422 = vector.extract_strided_slice %421 {offsets = [0, 0], sizes = [8, 32], strides = [1, 1]} : vector<8x128xf32> to vector<8x32xf32>
    %423 = vector.extract_strided_slice %421 {offsets = [0, 32], sizes = [8, 32], strides = [1, 1]} : vector<8x128xf32> to vector<8x32xf32>
    %424 = vector.extract_strided_slice %421 {offsets = [0, 64], sizes = [8, 32], strides = [1, 1]} : vector<8x128xf32> to vector<8x32xf32>
    %425 = vector.extract_strided_slice %421 {offsets = [0, 96], sizes = [8, 32], strides = [1, 1]} : vector<8x128xf32> to vector<8x32xf32>
    %426 = arith.mulf %423, %375 : vector<8x32xf32>
    %427 = arith.mulf %422, %424 : vector<8x32xf32>
    %428 = arith.addf %426, %427 : vector<8x32xf32>
    %429 = math.tanh %428 : vector<8x32xf32>
    %430 = arith.mulf %425, %429 : vector<8x32xf32>
    %c0_i32_154 = arith.constant 0 : i32
    %431 = arith.cmpi sge, %409, %c0_i32_154 : i32
    %c8_i32_155 = arith.constant 8 : i32
    %432 = arith.cmpi slt, %409, %c8_i32_155 : i32
    %433 = arith.andi %431, %432 : i1
    %434 = arith.select %433, %430, %374 : vector<8x32xf32>
    %435 = arith.select %433, %428, %375 : vector<8x32xf32>
    %c0_i32_156 = arith.constant 0 : i32
    %436 = arith.maxsi %409, %c0_i32_156 : i32
    %c8_i32_157 = arith.constant 8 : i32
    %437 = arith.muli %436, %c8_i32_157 : i32
    %438 = tpu.assume_multiple %437, 8 : i32
    %439 = arith.index_cast %438 : i32 to index
    %c0_158 = arith.constant 0 : index
    %440 = vector.load %arg11[%439, %c0_158] : memref<64x32xf32, #tpu.memory_space<vmem>>, vector<8x32xf32>
    tpu.vector_store %arg11[%439, %c0_158], %434 {strides = array<i32>} : memref<64x32xf32, #tpu.memory_space<vmem>>, vector<8x32xf32>,
    %c7_i32_159 = arith.constant 7 : i32
    %c0_i32_160 = arith.constant 0 : i32
    %441 = arith.subi %c7_i32_159, %c0_i32_160 : i32
    %c7_i32_161 = arith.constant 7 : i32
    %442 = arith.minsi %c7_i32_159, %c7_i32_161 : i32
    %c8_i32_162 = arith.constant 8 : i32
    %443 = arith.muli %442, %c8_i32_162 : i32
    %444 = tpu.assume_multiple %443, 8 : i32
    %445 = arith.index_cast %444 : i32 to index
    %c0_163 = arith.constant 0 : index
    %446 = vector.load %arg10[%445, %c0_163] : memref<64x128xf32, #tpu.memory_space<vmem>>, vector<8x128xf32>
    %c0_164 = arith.constant 0 : index
    %c0_165 = arith.constant 0 : index
    %447 = vector.load %arg2[%c0_164, %c0_165] : memref<32x128xf32, #tpu.memory_space<vmem>>, vector<32x128xf32>
    %cst_166 = arith.constant dense<0.000000e+00> : vector<8x128xf32>
    %448 = tpu.matmul %407, %447, %cst_166 {dimension_numbers = #tpu.dot_dimension_numbers<[1], [0], [0], [1], [0, 0, 1, 1], [], []>} : vector<8x32xf32>, vector<32x128xf32>, vector<8x128xf32> -> vector<8x128xf32>
    %449 = arith.addf %446, %448 : vector<8x128xf32>
    %450 = math.tanh %449 : vector<8x128xf32>
    %451 = vector.broadcast %15 : vector<1x128xf32> to vector<8x128xf32>
    %452 = arith.mulf %451, %450 : vector<8x128xf32>
    %453 = vector.broadcast %18 : vector<1x128xf32> to vector<8x128xf32>
    %454 = arith.addf %452, %453 : vector<8x128xf32>
    %455 = vector.extract_strided_slice %454 {offsets = [0, 0], sizes = [8, 32], strides = [1, 1]} : vector<8x128xf32> to vector<8x32xf32>
    %456 = vector.extract_strided_slice %454 {offsets = [0, 32], sizes = [8, 32], strides = [1, 1]} : vector<8x128xf32> to vector<8x32xf32>
    %457 = vector.extract_strided_slice %454 {offsets = [0, 64], sizes = [8, 32], strides = [1, 1]} : vector<8x128xf32> to vector<8x32xf32>
    %458 = vector.extract_strided_slice %454 {offsets = [0, 96], sizes = [8, 32], strides = [1, 1]} : vector<8x128xf32> to vector<8x32xf32>
    %459 = arith.mulf %456, %408 : vector<8x32xf32>
    %460 = arith.mulf %455, %457 : vector<8x32xf32>
    %461 = arith.addf %459, %460 : vector<8x32xf32>
    %462 = math.tanh %461 : vector<8x32xf32>
    %463 = arith.mulf %458, %462 : vector<8x32xf32>
    %c0_i32_167 = arith.constant 0 : i32
    %464 = arith.cmpi sge, %441, %c0_i32_167 : i32
    %c8_i32_168 = arith.constant 8 : i32
    %465 = arith.cmpi slt, %441, %c8_i32_168 : i32
    %466 = arith.andi %464, %465 : i1
    %467 = arith.select %466, %463, %407 : vector<8x32xf32>
    %468 = arith.select %466, %461, %408 : vector<8x32xf32>
    %c1_i32_169 = arith.constant 1 : i32
    %469 = arith.subi %c7_i32_159, %c1_i32_169 : i32
    %c0_170 = arith.constant 0 : index
    %c0_171 = arith.constant 0 : index
    %470 = vector.load %arg4[%c0_170, %c0_171] : memref<32x128xf32, #tpu.memory_space<vmem>>, vector<32x128xf32>
    %cst_172 = arith.constant dense<0.000000e+00> : vector<8x128xf32>
    %471 = tpu.matmul %407, %470, %cst_172 {dimension_numbers = #tpu.dot_dimension_numbers<[1], [0], [0], [1], [0, 0, 1, 1], [], []>} : vector<8x32xf32>, vector<32x128xf32>, vector<8x128xf32> -> vector<8x128xf32>
    %472 = vector.broadcast %19 : vector<1x128xf32> to vector<8x128xf32>
    %473 = arith.addf %471, %472 : vector<8x128xf32>
    %c0_173 = arith.constant 0 : index
    %c0_174 = arith.constant 0 : index
    %474 = vector.load %arg5[%c0_173, %c0_174] : memref<32x128xf32, #tpu.memory_space<vmem>>, vector<32x128xf32>
    %cst_175 = arith.constant dense<0.000000e+00> : vector<8x128xf32>
    %475 = tpu.matmul %434, %474, %cst_175 {dimension_numbers = #tpu.dot_dimension_numbers<[1], [0], [0], [1], [0, 0, 1, 1], [], []>} : vector<8x32xf32>, vector<32x128xf32>, vector<8x128xf32> -> vector<8x128xf32>
    %476 = arith.addf %473, %475 : vector<8x128xf32>
    %477 = math.tanh %476 : vector<8x128xf32>
    %478 = vector.broadcast %15 : vector<1x128xf32> to vector<8x128xf32>
    %479 = arith.mulf %478, %477 : vector<8x128xf32>
    %480 = vector.broadcast %18 : vector<1x128xf32> to vector<8x128xf32>
    %481 = arith.addf %479, %480 : vector<8x128xf32>
    %482 = vector.extract_strided_slice %481 {offsets = [0, 0], sizes = [8, 32], strides = [1, 1]} : vector<8x128xf32> to vector<8x32xf32>
    %483 = vector.extract_strided_slice %481 {offsets = [0, 32], sizes = [8, 32], strides = [1, 1]} : vector<8x128xf32> to vector<8x32xf32>
    %484 = vector.extract_strided_slice %481 {offsets = [0, 64], sizes = [8, 32], strides = [1, 1]} : vector<8x128xf32> to vector<8x32xf32>
    %485 = vector.extract_strided_slice %481 {offsets = [0, 96], sizes = [8, 32], strides = [1, 1]} : vector<8x128xf32> to vector<8x32xf32>
    %486 = arith.mulf %483, %435 : vector<8x32xf32>
    %487 = arith.mulf %482, %484 : vector<8x32xf32>
    %488 = arith.addf %486, %487 : vector<8x32xf32>
    %489 = math.tanh %488 : vector<8x32xf32>
    %490 = arith.mulf %485, %489 : vector<8x32xf32>
    %c0_i32_176 = arith.constant 0 : i32
    %491 = arith.cmpi sge, %469, %c0_i32_176 : i32
    %c8_i32_177 = arith.constant 8 : i32
    %492 = arith.cmpi slt, %469, %c8_i32_177 : i32
    %493 = arith.andi %491, %492 : i1
    %494 = arith.select %493, %490, %434 : vector<8x32xf32>
    %495 = arith.select %493, %488, %435 : vector<8x32xf32>
    %c0_i32_178 = arith.constant 0 : i32
    %496 = arith.maxsi %469, %c0_i32_178 : i32
    %c8_i32_179 = arith.constant 8 : i32
    %497 = arith.muli %496, %c8_i32_179 : i32
    %498 = tpu.assume_multiple %497, 8 : i32
    %499 = arith.index_cast %498 : i32 to index
    %c0_180 = arith.constant 0 : index
    %500 = vector.load %arg11[%499, %c0_180] : memref<64x32xf32, #tpu.memory_space<vmem>>, vector<8x32xf32>
    tpu.vector_store %arg11[%499, %c0_180], %494 {strides = array<i32>} : memref<64x32xf32, #tpu.memory_space<vmem>>, vector<8x32xf32>,
    %c8_i32_181 = arith.constant 8 : i32
    %c0_i32_182 = arith.constant 0 : i32
    %501 = arith.subi %c8_i32_181, %c0_i32_182 : i32
    %c7_i32_183 = arith.constant 7 : i32
    %502 = arith.minsi %c8_i32_181, %c7_i32_183 : i32
    %c8_i32_184 = arith.constant 8 : i32
    %503 = arith.muli %502, %c8_i32_184 : i32
    %504 = tpu.assume_multiple %503, 8 : i32
    %505 = arith.index_cast %504 : i32 to index
    %c0_185 = arith.constant 0 : index
    %506 = vector.load %arg10[%505, %c0_185] : memref<64x128xf32, #tpu.memory_space<vmem>>, vector<8x128xf32>
    %c0_186 = arith.constant 0 : index
    %c0_187 = arith.constant 0 : index
    %507 = vector.load %arg2[%c0_186, %c0_187] : memref<32x128xf32, #tpu.memory_space<vmem>>, vector<32x128xf32>
    %cst_188 = arith.constant dense<0.000000e+00> : vector<8x128xf32>
    %508 = tpu.matmul %467, %507, %cst_188 {dimension_numbers = #tpu.dot_dimension_numbers<[1], [0], [0], [1], [0, 0, 1, 1], [], []>} : vector<8x32xf32>, vector<32x128xf32>, vector<8x128xf32> -> vector<8x128xf32>
    %509 = arith.addf %506, %508 : vector<8x128xf32>
    %510 = math.tanh %509 : vector<8x128xf32>
    %511 = vector.broadcast %15 : vector<1x128xf32> to vector<8x128xf32>
    %512 = arith.mulf %511, %510 : vector<8x128xf32>
    %513 = vector.broadcast %18 : vector<1x128xf32> to vector<8x128xf32>
    %514 = arith.addf %512, %513 : vector<8x128xf32>
    %515 = vector.extract_strided_slice %514 {offsets = [0, 0], sizes = [8, 32], strides = [1, 1]} : vector<8x128xf32> to vector<8x32xf32>
    %516 = vector.extract_strided_slice %514 {offsets = [0, 32], sizes = [8, 32], strides = [1, 1]} : vector<8x128xf32> to vector<8x32xf32>
    %517 = vector.extract_strided_slice %514 {offsets = [0, 64], sizes = [8, 32], strides = [1, 1]} : vector<8x128xf32> to vector<8x32xf32>
    %518 = vector.extract_strided_slice %514 {offsets = [0, 96], sizes = [8, 32], strides = [1, 1]} : vector<8x128xf32> to vector<8x32xf32>
    %519 = arith.mulf %516, %468 : vector<8x32xf32>
    %520 = arith.mulf %515, %517 : vector<8x32xf32>
    %521 = arith.addf %519, %520 : vector<8x32xf32>
    %522 = math.tanh %521 : vector<8x32xf32>
    %523 = arith.mulf %518, %522 : vector<8x32xf32>
    %c0_i32_189 = arith.constant 0 : i32
    %524 = arith.cmpi sge, %501, %c0_i32_189 : i32
    %c8_i32_190 = arith.constant 8 : i32
    %525 = arith.cmpi slt, %501, %c8_i32_190 : i32
    %526 = arith.andi %524, %525 : i1
    %527 = arith.select %526, %523, %467 : vector<8x32xf32>
    %528 = arith.select %526, %521, %468 : vector<8x32xf32>
    %c1_i32_191 = arith.constant 1 : i32
    %529 = arith.subi %c8_i32_181, %c1_i32_191 : i32
    %c0_192 = arith.constant 0 : index
    %c0_193 = arith.constant 0 : index
    %530 = vector.load %arg4[%c0_192, %c0_193] : memref<32x128xf32, #tpu.memory_space<vmem>>, vector<32x128xf32>
    %cst_194 = arith.constant dense<0.000000e+00> : vector<8x128xf32>
    %531 = tpu.matmul %467, %530, %cst_194 {dimension_numbers = #tpu.dot_dimension_numbers<[1], [0], [0], [1], [0, 0, 1, 1], [], []>} : vector<8x32xf32>, vector<32x128xf32>, vector<8x128xf32> -> vector<8x128xf32>
    %532 = vector.broadcast %19 : vector<1x128xf32> to vector<8x128xf32>
    %533 = arith.addf %531, %532 : vector<8x128xf32>
    %c0_195 = arith.constant 0 : index
    %c0_196 = arith.constant 0 : index
    %534 = vector.load %arg5[%c0_195, %c0_196] : memref<32x128xf32, #tpu.memory_space<vmem>>, vector<32x128xf32>
    %cst_197 = arith.constant dense<0.000000e+00> : vector<8x128xf32>
    %535 = tpu.matmul %494, %534, %cst_197 {dimension_numbers = #tpu.dot_dimension_numbers<[1], [0], [0], [1], [0, 0, 1, 1], [], []>} : vector<8x32xf32>, vector<32x128xf32>, vector<8x128xf32> -> vector<8x128xf32>
    %536 = arith.addf %533, %535 : vector<8x128xf32>
    %537 = math.tanh %536 : vector<8x128xf32>
    %538 = vector.broadcast %15 : vector<1x128xf32> to vector<8x128xf32>
    %539 = arith.mulf %538, %537 : vector<8x128xf32>
    %540 = vector.broadcast %18 : vector<1x128xf32> to vector<8x128xf32>
    %541 = arith.addf %539, %540 : vector<8x128xf32>
    %542 = vector.extract_strided_slice %541 {offsets = [0, 0], sizes = [8, 32], strides = [1, 1]} : vector<8x128xf32> to vector<8x32xf32>
    %543 = vector.extract_strided_slice %541 {offsets = [0, 32], sizes = [8, 32], strides = [1, 1]} : vector<8x128xf32> to vector<8x32xf32>
    %544 = vector.extract_strided_slice %541 {offsets = [0, 64], sizes = [8, 32], strides = [1, 1]} : vector<8x128xf32> to vector<8x32xf32>
    %545 = vector.extract_strided_slice %541 {offsets = [0, 96], sizes = [8, 32], strides = [1, 1]} : vector<8x128xf32> to vector<8x32xf32>
    %546 = arith.mulf %543, %495 : vector<8x32xf32>
    %547 = arith.mulf %542, %544 : vector<8x32xf32>
    %548 = arith.addf %546, %547 : vector<8x32xf32>
    %549 = math.tanh %548 : vector<8x32xf32>
    %550 = arith.mulf %545, %549 : vector<8x32xf32>
    %c0_i32_198 = arith.constant 0 : i32
    %551 = arith.cmpi sge, %529, %c0_i32_198 : i32
    %c8_i32_199 = arith.constant 8 : i32
    %552 = arith.cmpi slt, %529, %c8_i32_199 : i32
    %553 = arith.andi %551, %552 : i1
    %554 = arith.select %553, %550, %494 : vector<8x32xf32>
    %555 = arith.select %553, %548, %495 : vector<8x32xf32>
    %c0_i32_200 = arith.constant 0 : i32
    %556 = arith.maxsi %529, %c0_i32_200 : i32
    %c8_i32_201 = arith.constant 8 : i32
    %557 = arith.muli %556, %c8_i32_201 : i32
    %558 = tpu.assume_multiple %557, 8 : i32
    %559 = arith.index_cast %558 : i32 to index
    %c0_202 = arith.constant 0 : index
    %560 = vector.load %arg11[%559, %c0_202] : memref<64x32xf32, #tpu.memory_space<vmem>>, vector<8x32xf32>
    tpu.vector_store %arg11[%559, %c0_202], %554 {strides = array<i32>} : memref<64x32xf32, #tpu.memory_space<vmem>>, vector<8x32xf32>,
    %c9_i32 = arith.constant 9 : i32
    %561 = tpu.iota {dimensions = array<i32: 0>} : vector<8x64xi32>
    %562 = tpu.iota {dimensions = array<i32: 1>} : vector<8x64xi32>
    %c8_i32_203 = arith.constant 8 : i32
    %563 = vector.broadcast %c8_i32_203 : i32 to vector<8x64xi32>
    %564 = arith.muli %561, %563 : vector<8x64xi32>
    %c0_i32_204 = arith.constant 0 : i32
    %565 = vector.broadcast %c0_i32_204 : i32 to vector<8x64xi32>
    %566 = arith.addi %564, %565 : vector<8x64xi32>
    %567 = arith.cmpi eq, %562, %566 : vector<8x64xi32>
    %568 = arith.extui %567 : vector<8x64xi1> to vector<8x64xi32>
    %569 = arith.sitofp %568 : vector<8x64xi32> to vector<8x64xf32>
    %c0_205 = arith.constant 0 : index
    %c0_206 = arith.constant 0 : index
    %570 = vector.load %arg11[%c0_205, %c0_206] : memref<64x32xf32, #tpu.memory_space<vmem>>, vector<64x32xf32>
    %cst_207 = arith.constant dense<0.000000e+00> : vector<8x32xf32>
    %571 = tpu.matmul %569, %570, %cst_207 {dimension_numbers = #tpu.dot_dimension_numbers<[1], [0], [0], [1], [0, 0, 1, 1], [], []>} : vector<8x64xf32>, vector<64x32xf32>, vector<8x32xf32> -> vector<8x32xf32>
    %c0_208 = arith.constant 0 : index
    %c0_209 = arith.constant 0 : index
    %572 = vector.load %arg7[%c0_208, %c0_209] : memref<32x4xf32, #tpu.memory_space<vmem>>, vector<32x4xf32>
    %cst_210 = arith.constant dense<0.000000e+00> : vector<8x4xf32>
    %573 = tpu.matmul %571, %572, %cst_210 {dimension_numbers = #tpu.dot_dimension_numbers<[1], [0], [0], [1], [0, 0, 1, 1], [], []>} : vector<8x32xf32>, vector<32x4xf32>, vector<8x4xf32> -> vector<8x4xf32>
    %c0_211 = arith.constant 0 : index
    %c0_212 = arith.constant 0 : index
    %574 = vector.load %arg8[%c0_211, %c0_212] : memref<1x4xf32, #tpu.memory_space<vmem>>, vector<1x4xf32>
    %575 = vector.broadcast %574 : vector<1x4xf32> to vector<8x4xf32>
    %576 = arith.addf %573, %575 : vector<8x4xf32>
    %c0_213 = arith.constant 0 : index
    %c0_214 = arith.constant 0 : index
    %577 = vector.load %arg9[%c0_213, %c0_214] : memref<8x4xf32, #tpu.memory_space<vmem>>, vector<8x4xf32>
    tpu.vector_store %arg9[%c0_213, %c0_214], %576 {strides = array<i32>} : memref<8x4xf32, #tpu.memory_space<vmem>>, vector<8x4xf32>,
    return
  }
}

</mosaic_0001>

<llo_original>
// kernel: tpu_custom_call.1
$region0: #{tpu_custom_call.1}
  #allocation0 [shape = 'u32[]', space=smem, size = 0x4, offset = 0x4, fixed_abs, tag = 'smem constant byte address 0x4 - core index']
  #allocation1 [shape = 'u32[72,128]{1,0:T(1,128)}', space=vmem, size = 0x9000, scoped, tag = 'internal scratch']
  #allocation2 [shape = 'f32[64,128]{1,0:T(8,128)}', space=vmem, size = 0x8000, scoped, tag = 'scratch operand']
  #allocation3 [shape = 'f32[64,32]{1,0:T(8,128)}', space=vmem, size = 0x8000, scoped, tag = 'scratch operand']
  %s0 = inlined_call_operand.vmem [shape: f32[64,8], index: 0, kind: input, shape index: {}]
  %s1 = inlined_call_operand.hbm [shape: f32[8,128], index: 1, kind: input, shape index: {}]
  %s2 = inlined_call_operand.vmem [shape: f32[32,128], index: 2, kind: input, shape index: {}]
  %s3 = inlined_call_operand.vmem [shape: f32[1,128], index: 3, kind: input, shape index: {}]
  %s4 = inlined_call_operand.vmem [shape: f32[32,128], index: 4, kind: input, shape index: {}]
  %s5 = inlined_call_operand.vmem [shape: f32[32,128], index: 5, kind: input, shape index: {}]
  %s6 = inlined_call_operand.vmem [shape: f32[1,128], index: 6, kind: input, shape index: {}]
  %s7 = inlined_call_operand.vmem [shape: f32[32,4], index: 7, kind: input, shape index: {}]
  %s8 = inlined_call_operand.vmem [shape: f32[1,4], index: 8, kind: input, shape index: {}]
  %s9 = inlined_call_operand.vmem [shape: f32[8,4], index: 9, kind: output, shape index: {}]
  %s10 = sld [smem:[#allocation0]]
  $region50: #{tpu_custom_call.1} parent=0
    _
  %s12 = ssub.s32 1, %s10
  %s13 = scalar_select 0, %s12, %s10
  $region1: #{tpu_custom_call.1} parent=0
    #allocation4 [shape = 'u8[4096]{0}', space=vmem, size = 0x1000, scoped, tag = 'input window, operand 1, single buffered']
    #allocation5 [shape = 's32[1]{0}', space=sflag, size = 0x4, scoped, tag = 'scoped memory for tpu_custom_call.1']
    %14 = vsyncpa [#allocation5], 0
    // Predicated region
    $region2: #{tpu_custom_call.1} parent=1 // pred_check
      _
    $region3: #{tpu_custom_call.1} parent=1 // pred_check_branch
      %16 = sbr.rel (0) target = $region5
    $region4: #{tpu_custom_call.1} parent=1 // pred_region
      _
    $region5: #{tpu_custom_call.1} parent=1 // pred_fallthru
      _
    // Predicated region
    $region6: #{tpu_custom_call.1} parent=1 // pred_check
      _
    $region7: #{tpu_custom_call.1} parent=1 // pred_check_branch
      %18 = sbr.rel (0) target = $region9
    $region8: #{tpu_custom_call.1} parent=1 // pred_region
      %20 = vsyncadd [#allocation5], 0
      %s22 = sshll.u32 %s1, 4
      %s23 = int_to_ptr.hbm [resolvable:$true] %s22
      %s24 = sshll.u32 [#allocation4], 4
      %s25 = int_to_ptr.vmem [resolvable:$true] %s24
      %27 = dma.hbm_to_vmem [thread:$0]  %s23, 128, %s25, [#allocation5]
    $region9: #{tpu_custom_call.1} parent=1 // pred_fallthru
      _
    // Predicated region
    $region10: #{tpu_custom_call.1} parent=1 // pred_check
      _
    $region11: #{tpu_custom_call.1} parent=1 // pred_check_branch
      %29 = sbr.rel (0) target = $region13
    $region12: #{tpu_custom_call.1} parent=1 // pred_region
      _
    $region13: #{tpu_custom_call.1} parent=1 // pred_fallthru
      _
    // Predicated region
    $region14: #{tpu_custom_call.1} parent=1 // pred_check
      _
    $region15: #{tpu_custom_call.1} parent=1 // pred_check_branch
      %31 = sbr.rel (0) target = $region17
    $region16: #{tpu_custom_call.1} parent=1 // pred_region
      _
    $region17: #{tpu_custom_call.1} parent=1 // pred_fallthru
      _
    // Predicated region
    $region18: #{tpu_custom_call.1} parent=1 // pred_check
      _
    $region19: #{tpu_custom_call.1} parent=1 // pred_check_branch
      %33 = sbr.rel (0) target = $region21
    $region20: #{tpu_custom_call.1} parent=1 // pred_region
      _
    $region21: #{tpu_custom_call.1} parent=1 // pred_fallthru
      _
    // Predicated region
    $region22: #{tpu_custom_call.1} parent=1 // pred_check
      _
    $region23: #{tpu_custom_call.1} parent=1 // pred_check_branch
      %35 = sbr.rel (0) target = $region25
    $region24: #{tpu_custom_call.1} parent=1 // pred_region
      _
    $region25: #{tpu_custom_call.1} parent=1 // pred_fallthru
      _
    // Predicated region
    $region26: #{tpu_custom_call.1} parent=1 // pred_check
      _
    $region27: #{tpu_custom_call.1} parent=1 // pred_check_branch
      %37 = sbr.rel (0) target = $region29
    $region28: #{tpu_custom_call.1} parent=1 // pred_region
      _
    $region29: #{tpu_custom_call.1} parent=1 // pred_fallthru
      _
    // Predicated region
    $region30: #{tpu_custom_call.1} parent=1 // pred_check
      _
    $region31: #{tpu_custom_call.1} parent=1 // pred_check_branch
      %39 = sbr.rel (0) target = $region33
    $region32: #{tpu_custom_call.1} parent=1 // pred_region
      _
    $region33: #{tpu_custom_call.1} parent=1 // pred_fallthru
      _
    // Predicated region
    $region34: #{tpu_custom_call.1} parent=1 // pred_check
      _
    $region35: #{tpu_custom_call.1} parent=1 // pred_check_branch
      %41 = sbr.rel (0) target = $region37
    $region36: #{tpu_custom_call.1} parent=1 // pred_region
      _
    $region37: #{tpu_custom_call.1} parent=1 // pred_fallthru
      _
    // Predicated region
    $region38: #{tpu_custom_call.1} parent=1 // pred_check
      _
    $region39: #{tpu_custom_call.1} parent=1 // pred_check_branch
      %43 = sbr.rel (0) target = $region41
    $region40: #{tpu_custom_call.1} parent=1 // pred_region
      %45 = dma.done [#allocation5], 128
    $region41: #{tpu_custom_call.1} parent=1 // pred_fallthru
      _
    %v46 = vld [vmem:[%s0] sm:$0xff]
    %v47 = vld [vmem:[%s0 + $0x8] sm:$0xff]
    %v48 = vld [vmem:[%s0 + $0x10] sm:$0xff]
    %v49 = vld [vmem:[%s0 + $0x18] sm:$0xff]
    %v50 = vld [vmem:[%s0 + $0x20] sm:$0xff]
    %v51 = vld [vmem:[%s0 + $0x28] sm:$0xff]
    %v52 = vld [vmem:[%s0 + $0x30] sm:$0xff]
    %v53 = vld [vmem:[%s0 + $0x38] sm:$0xff]
    %v54 = vld [vmem:[#allocation4] sm:$0xff]
    %v55 = vld [vmem:[%s3] sm:$0x1]
    %v57 = vperm.slane %v55, 0
    %vm59 = vcmask 64512
    %v61 = vsel %vm59, %v46, 0
    %v64 = vsel %vm59, %v47, 0
    %v67 = vsel %vm59, %v48, 0
    %v70 = vsel %vm59, %v49, 0
    %v73 = vsel %vm59, %v50, 0
    %v76 = vsel %vm59, %v51, 0
    %v79 = vsel %vm59, %v52, 0
    %v82 = vsel %vm59, %v53, 0
    %84 = vmatpush.msra.mxu0 0.0
    %85 = vmatpush.msra.mxu0 0.0
    %86 = vmatpush.msra.mxu0 0.0
    %87 = vmatpush.msra.mxu0 0.0
    %88 = vmatpush.msra.mxu0 0.0
    %89 = vmatpush.msra.mxu0 0.0
    %90 = vmatpush.msra.mxu0 0.0
    %91 = vmatpush.msra.mxu0 0.0
    %92 = vmatpush.msra.mxu0 0.0
    %93 = vmatpush.msra.mxu0 0.0
    %94 = vmatpush.msra.mxu0 0.0
    %95 = vmatpush.msra.mxu0 0.0
    %96 = vmatpush.msra.mxu0 0.0
    %97 = vmatpush.msra.mxu0 0.0
    %98 = vmatpush.msra.mxu0 0.0
    %99 = vmatpush.msra.mxu0 %v54
    %100 = vmatmul.f32.gmra.mxu0 %v61
    %v101 = vpop.f32.mrf.mxu0
    %v102 = vadd.f32 %v57, %v101
    %103 = vmatmul.f32.gmra.mxu0 %v64
    %v104 = vpop.f32.mrf.mxu0
    %v105 = vadd.f32 %v57, %v104
    %106 = vmatmul.f32.gmra.mxu0 %v67
    %v107 = vpop.f32.mrf.mxu0
    %v108 = vadd.f32 %v57, %v107
    %109 = vmatmul.f32.gmra.mxu0 %v70
    %v110 = vpop.f32.mrf.mxu0
    %v111 = vadd.f32 %v57, %v110
    %112 = vmatmul.f32.gmra.mxu0 %v73
    %v113 = vpop.f32.mrf.mxu0
    %v114 = vadd.f32 %v57, %v113
    %115 = vmatmul.f32.gmra.mxu0 %v76
    %v116 = vpop.f32.mrf.mxu0
    %v117 = vadd.f32 %v57, %v116
    %118 = vmatmul.f32.gmra.mxu0 %v79
    %v119 = vpop.f32.mrf.mxu0
    %v120 = vadd.f32 %v57, %v119
    %121 = vmatmul.f32.gmra.mxu0 %v82
    %v122 = vpop.f32.mrf.mxu0
    %v123 = vadd.f32 %v57, %v122
    %124 = vdwg.mxu0
    %125 = vst [vmem:[#allocation2] sm:$0xff] %v102
    %126 = vst [vmem:[#allocation2 + $0x8] sm:$0xff] %v105
    %127 = vst [vmem:[#allocation2 + $0x10] sm:$0xff] %v108
    %128 = vst [vmem:[#allocation2 + $0x18] sm:$0xff] %v111
    %129 = vst [vmem:[#allocation2 + $0x20] sm:$0xff] %v114
    %130 = vst [vmem:[#allocation2 + $0x28] sm:$0xff] %v117
    %131 = vst [vmem:[#allocation2 + $0x30] sm:$0xff] %v120
    %132 = vst [vmem:[#allocation2 + $0x38] sm:$0xff] %v123
    %v133 = vlaneseq
    %v134 = vand.u32 %v133, 127
    %vm135 = vcmp.ge.s32.totalorder %v134, 64
    %vm136 = vcmp.lt.s32.totalorder %v134, 96
    %vm137 = vmand %vm135, %vm136
    %v138 = vsel %vm137, 1.0, 0.5
    %v139 = vsel %vm137, 0.0, 0.5
    %v140 = vld [vmem:[%s6] sm:$0x1]
    %v141 = vld [vmem:[#allocation2] sm:$0xff]
    %v142 = vld [vmem:[%s2] sm:$0xff]
    %v143 = vld [vmem:[%s2 + $0x8] sm:$0xff]
    %v144 = vld [vmem:[%s2 + $0x10] sm:$0xff]
    %v145 = vld [vmem:[%s2 + $0x18] sm:$0xff]
    %vm146 = vcmask 261120
    %v148 = vsel %vm146, 0.0, 0
    %150 = vmatpush.msra.mxu0 0.0
    %151 = vmatpush.msra.mxu0 0.0
    %152 = vmatpush.msra.mxu0 0.0
    %153 = vmatpush.msra.mxu0 0.0
    %154 = vmatpush.msra.mxu0 0.0
    %155 = vmatpush.msra.mxu0 0.0
    %156 = vmatpush.msra.mxu0 0.0
    %157 = vmatpush.msra.mxu0 0.0
    %158 = vmatpush.msra.mxu0 0.0
    %159 = vmatpush.msra.mxu0 0.0
    %160 = vmatpush.msra.mxu0 0.0
    %161 = vmatpush.msra.mxu0 0.0
    %162 = vmatpush.msra.mxu0 %v145
    %163 = vmatpush.msra.mxu0 %v144
    %164 = vmatpush.msra.mxu0 %v143
    %165 = vmatpush.msra.mxu0 %v142
    %166 = vmatmul.f32.gmra.mxu0 %v148
    %v167 = vpop.f32.mrf.mxu0
    %v168 = vadd.f32 0.0, %v167
    %169 = vdwg.mxu0
    %v170 = vadd.f32 %v141, %v168
    %v171 = vtanh.pop %v170
    %v172 = vmul.f32 %v138, %v171
    %v173 = vadd.f32 %v172, %v139
    %v174 = vmul.f32 %v173, 0.0
    %176 = vrot.lane.b32.xlu0 %v173, 64
    %v177 = vpop.permute.xlu0 %176
    %v179 = vmul.f32 %v173, %v177
    %181 = vrot.lane.b32.xlu0 %v179, 32
    %v182 = vpop.permute.xlu0 %181
    %v184 = vadd.f32 %v174, %v182
    %v185 = vtanh.pop %v184
    %187 = vrot.lane.b32.xlu0 %v185, 64
    %v188 = vpop.permute.xlu0 %187
    %v190 = vmul.f32 %v173, %v188
    %191 = vst.msk [vmem:[#allocation3] sm:$0xff] %vm146, 0.0
    %s192 = scalar_lea.vmem [#allocation2], 8
    %v193 = vld [vmem:[%s192] sm:$0xff]
    %v194 = vld [vmem:[%s2] sm:$0xff]
    %v195 = vld [vmem:[%s2 + $0x8] sm:$0xff]
    %v196 = vld [vmem:[%s2 + $0x10] sm:$0xff]
    %v197 = vld [vmem:[%s2 + $0x18] sm:$0xff]
    %199 = vrot.lane.b32.xlu0 %v190, 32
    %v200 = vpop.permute.xlu0 %199
    %v201 = vsel %vm146, %v200, 0
    %203 = vmatpush.msra.mxu0 0.0
    %204 = vmatpush.msra.mxu0 0.0
    %205 = vmatpush.msra.mxu0 0.0
    %206 = vmatpush.msra.mxu0 0.0
    %207 = vmatpush.msra.mxu0 0.0
    %208 = vmatpush.msra.mxu0 0.0
    %209 = vmatpush.msra.mxu0 0.0
    %210 = vmatpush.msra.mxu0 0.0
    %211 = vmatpush.msra.mxu0 0.0
    %212 = vmatpush.msra.mxu0 0.0
    %213 = vmatpush.msra.mxu0 0.0
    %214 = vmatpush.msra.mxu0 0.0
    %215 = vmatpush.msra.mxu0 %v197
    %216 = vmatpush.msra.mxu0 %v196
    %217 = vmatpush.msra.mxu0 %v195
    %218 = vmatpush.msra.mxu0 %v194
    %219 = vmatmul.f32.gmra.mxu0 %v201
    %v220 = vpop.f32.mrf.mxu0
    %v221 = vadd.f32 0.0, %v220
    %222 = vdwg.mxu0
    %v223 = vadd.f32 %v193, %v221
    %v224 = vtanh.pop %v223
    %v225 = vmul.f32 %v138, %v224
    %v226 = vadd.f32 %v225, %v139
    %v227 = vmul.f32 %v226, %v184
    %229 = vrot.lane.b32.xlu0 %v226, 64
    %v230 = vpop.permute.xlu0 %229
    %v232 = vmul.f32 %v226, %v230
    %234 = vrot.lane.b32.xlu0 %v232, 32
    %v235 = vpop.permute.xlu0 %234
    %v237 = vadd.f32 %v227, %v235
    %v238 = vtanh.pop %v237
    %240 = vrot.lane.b32.xlu0 %v238, 64
    %v241 = vpop.permute.xlu0 %240
    %v243 = vmul.f32 %v226, %v241
    %v244 = vld [vmem:[%s4] sm:$0xff]
    %v245 = vld [vmem:[%s4 + $0x8] sm:$0xff]
    %v246 = vld [vmem:[%s4 + $0x10] sm:$0xff]
    %v247 = vld [vmem:[%s4 + $0x18] sm:$0xff]
    %v249 = vperm.slane %v140, 0
    %251 = vmatpush.msra.mxu0 0.0
    %252 = vmatpush.msra.mxu0 0.0
    %253 = vmatpush.msra.mxu0 0.0
    %254 = vmatpush.msra.mxu0 0.0
    %255 = vmatpush.msra.mxu0 0.0
    %256 = vmatpush.msra.mxu0 0.0
    %257 = vmatpush.msra.mxu0 0.0
    %258 = vmatpush.msra.mxu0 0.0
    %259 = vmatpush.msra.mxu0 0.0
    %260 = vmatpush.msra.mxu0 0.0
    %261 = vmatpush.msra.mxu0 0.0
    %262 = vmatpush.msra.mxu0 0.0
    %263 = vmatpush.msra.mxu0 %v247
    %264 = vmatpush.msra.mxu0 %v246
    %265 = vmatpush.msra.mxu0 %v245
    %266 = vmatpush.msra.mxu0 %v244
    %267 = vmatmul.f32.gmra.mxu0 %v201
    %v268 = vpop.f32.mrf.mxu0
    %v269 = vadd.f32 %v249, %v268
    %270 = vdwg.mxu0
    %v271 = vld [vmem:[%s5] sm:$0xff]
    %v272 = vld [vmem:[%s5 + $0x8] sm:$0xff]
    %v273 = vld [vmem:[%s5 + $0x10] sm:$0xff]
    %v274 = vld [vmem:[%s5 + $0x18] sm:$0xff]
    %275 = vmatpush.msra.mxu0 0.0
    %276 = vmatpush.msra.mxu0 0.0
    %277 = vmatpush.msra.mxu0 0.0
    %278 = vmatpush.msra.mxu0 0.0
    %279 = vmatpush.msra.mxu0 0.0
    %280 = vmatpush.msra.mxu0 0.0
    %281 = vmatpush.msra.mxu0 0.0
    %282 = vmatpush.msra.mxu0 0.0
    %283 = vmatpush.msra.mxu0 0.0
    %284 = vmatpush.msra.mxu0 0.0
    %285 = vmatpush.msra.mxu0 0.0
    %286 = vmatpush.msra.mxu0 0.0
    %287 = vmatpush.msra.mxu0 %v274
    %288 = vmatpush.msra.mxu0 %v273
    %289 = vmatpush.msra.mxu0 %v272
    %290 = vmatpush.msra.mxu0 %v271
    %291 = vmatmul.f32.gmra.mxu0 %v148
    %v292 = vpop.f32.mrf.mxu0
    %v293 = vadd.f32 0.0, %v292
    %294 = vdwg.mxu0
    %v295 = vadd.f32 %v269, %v293
    %v296 = vtanh.pop %v295
    %v297 = vmul.f32 %v138, %v296
    %v298 = vadd.f32 %v297, %v139
    %v299 = vmul.f32 %v298, 0.0
    %301 = vrot.lane.b32.xlu0 %v298, 64
    %v302 = vpop.permute.xlu0 %301
    %v304 = vmul.f32 %v298, %v302
    %306 = vrot.lane.b32.xlu0 %v304, 32
    %v307 = vpop.permute.xlu0 %306
    %v309 = vadd.f32 %v299, %v307
    %v310 = vtanh.pop %v309
    %312 = vrot.lane.b32.xlu0 %v310, 64
    %v313 = vpop.permute.xlu0 %312
    %v315 = vmul.f32 %v298, %v313
    %317 = vrot.lane.b32.xlu0 %v315, 32
    %v318 = vpop.permute.xlu0 %317
    %320 = vst.msk [vmem:[#allocation3] sm:$0xff] %vm146, %v318
    %s321 = scalar_lea.vmem [#allocation2], 16
    %v322 = vld [vmem:[%s321] sm:$0xff]
    %v323 = vld [vmem:[%s2] sm:$0xff]
    %v324 = vld [vmem:[%s2 + $0x8] sm:$0xff]
    %v325 = vld [vmem:[%s2 + $0x10] sm:$0xff]
    %v326 = vld [vmem:[%s2 + $0x18] sm:$0xff]
    %328 = vrot.lane.b32.xlu0 %v243, 32
    %v329 = vpop.permute.xlu0 %328
    %v330 = vsel %vm146, %v329, 0
    %332 = vmatpush.msra.mxu0 0.0
    %333 = vmatpush.msra.mxu0 0.0
    %334 = vmatpush.msra.mxu0 0.0
    %335 = vmatpush.msra.mxu0 0.0
    %336 = vmatpush.msra.mxu0 0.0
    %337 = vmatpush.msra.mxu0 0.0
    %338 = vmatpush.msra.mxu0 0.0
    %339 = vmatpush.msra.mxu0 0.0
    %340 = vmatpush.msra.mxu0 0.0
    %341 = vmatpush.msra.mxu0 0.0
    %342 = vmatpush.msra.mxu0 0.0
    %343 = vmatpush.msra.mxu0 0.0
    %344 = vmatpush.msra.mxu0 %v326
    %345 = vmatpush.msra.mxu0 %v325
    %346 = vmatpush.msra.mxu0 %v324
    %347 = vmatpush.msra.mxu0 %v323
    %348 = vmatmul.f32.gmra.mxu0 %v330
    %v349 = vpop.f32.mrf.mxu0
    %v350 = vadd.f32 0.0, %v349
    %351 = vdwg.mxu0
    %v352 = vadd.f32 %v322, %v350
    %v353 = vtanh.pop %v352
    %v354 = vmul.f32 %v138, %v353
    %v355 = vadd.f32 %v354, %v139
    %v356 = vmul.f32 %v355, %v237
    %358 = vrot.lane.b32.xlu0 %v355, 64
    %v359 = vpop.permute.xlu0 %358
    %v361 = vmul.f32 %v355, %v359
    %363 = vrot.lane.b32.xlu0 %v361, 32
    %v364 = vpop.permute.xlu0 %363
    %v366 = vadd.f32 %v356, %v364
    %v367 = vtanh.pop %v366
    %369 = vrot.lane.b32.xlu0 %v367, 64
    %v370 = vpop.permute.xlu0 %369
    %v372 = vmul.f32 %v355, %v370
    %v373 = vld [vmem:[%s4] sm:$0xff]
    %v374 = vld [vmem:[%s4 + $0x8] sm:$0xff]
    %v375 = vld [vmem:[%s4 + $0x10] sm:$0xff]
    %v376 = vld [vmem:[%s4 + $0x18] sm:$0xff]
    %377 = vmatpush.msra.mxu0 0.0
    %378 = vmatpush.msra.mxu0 0.0
    %379 = vmatpush.msra.mxu0 0.0
    %380 = vmatpush.msra.mxu0 0.0
    %381 = vmatpush.msra.mxu0 0.0
    %382 = vmatpush.msra.mxu0 0.0
    %383 = vmatpush.msra.mxu0 0.0
    %384 = vmatpush.msra.mxu0 0.0
    %385 = vmatpush.msra.mxu0 0.0
    %386 = vmatpush.msra.mxu0 0.0
    %387 = vmatpush.msra.mxu0 0.0
    %388 = vmatpush.msra.mxu0 0.0
    %389 = vmatpush.msra.mxu0 %v376
    %390 = vmatpush.msra.mxu0 %v375
    %391 = vmatpush.msra.mxu0 %v374
    %392 = vmatpush.msra.mxu0 %v373
    %393 = vmatmul.f32.gmra.mxu0 %v330
    %v394 = vpop.f32.mrf.mxu0
    %v395 = vadd.f32 %v249, %v394
    %396 = vdwg.mxu0
    %v397 = vld [vmem:[%s5] sm:$0xff]
    %v398 = vld [vmem:[%s5 + $0x8] sm:$0xff]
    %v399 = vld [vmem:[%s5 + $0x10] sm:$0xff]
    %v400 = vld [vmem:[%s5 + $0x18] sm:$0xff]
    %v401 = vsel %vm146, %v318, 0
    %403 = vmatpush.msra.mxu0 0.0
    %404 = vmatpush.msra.mxu0 0.0
    %405 = vmatpush.msra.mxu0 0.0
    %406 = vmatpush.msra.mxu0 0.0
    %407 = vmatpush.msra.mxu0 0.0
    %408 = vmatpush.msra.mxu0 0.0
    %409 = vmatpush.msra.mxu0 0.0
    %410 = vmatpush.msra.mxu0 0.0
    %411 = vmatpush.msra.mxu0 0.0
    %412 = vmatpush.msra.mxu0 0.0
    %413 = vmatpush.msra.mxu0 0.0
    %414 = vmatpush.msra.mxu0 0.0
    %415 = vmatpush.msra.mxu0 %v400
    %416 = vmatpush.msra.mxu0 %v399
    %417 = vmatpush.msra.mxu0 %v398
    %418 = vmatpush.msra.mxu0 %v397
    %419 = vmatmul.f32.gmra.mxu0 %v401
    %v420 = vpop.f32.mrf.mxu0
    %v421 = vadd.f32 0.0, %v420
    %422 = vdwg.mxu0
    %v423 = vadd.f32 %v395, %v421
    %v424 = vtanh.pop %v423
    %v425 = vmul.f32 %v138, %v424
    %v426 = vadd.f32 %v425, %v139
    %v427 = vmul.f32 %v426, %v309
    %429 = vrot.lane.b32.xlu0 %v426, 64
    %v430 = vpop.permute.xlu0 %429
    %v432 = vmul.f32 %v426, %v430
    %434 = vrot.lane.b32.xlu0 %v432, 32
    %v435 = vpop.permute.xlu0 %434
    %v437 = vadd.f32 %v427, %v435
    %v438 = vtanh.pop %v437
    %440 = vrot.lane.b32.xlu0 %v438, 64
    %v441 = vpop.permute.xlu0 %440
    %v443 = vmul.f32 %v426, %v441
    %445 = vrot.lane.b32.xlu0 %v443, 32
    %v446 = vpop.permute.xlu0 %445
    %s448 = scalar_lea.vmem [#allocation3], 8
    %449 = vst.msk [vmem:[%s448] sm:$0xff] %vm146, %v446
    %s450 = scalar_lea.vmem [#allocation2], 24
    %v451 = vld [vmem:[%s450] sm:$0xff]
    %v452 = vld [vmem:[%s2] sm:$0xff]
    %v453 = vld [vmem:[%s2 + $0x8] sm:$0xff]
    %v454 = vld [vmem:[%s2 + $0x10] sm:$0xff]
    %v455 = vld [vmem:[%s2 + $0x18] sm:$0xff]
    %457 = vrot.lane.b32.xlu0 %v372, 32
    %v458 = vpop.permute.xlu0 %457
    %v459 = vsel %vm146, %v458, 0
    %461 = vmatpush.msra.mxu0 0.0
    %462 = vmatpush.msra.mxu0 0.0
    %463 = vmatpush.msra.mxu0 0.0
    %464 = vmatpush.msra.mxu0 0.0
    %465 = vmatpush.msra.mxu0 0.0
    %466 = vmatpush.msra.mxu0 0.0
    %467 = vmatpush.msra.mxu0 0.0
    %468 = vmatpush.msra.mxu0 0.0
    %469 = vmatpush.msra.mxu0 0.0
    %470 = vmatpush.msra.mxu0 0.0
    %471 = vmatpush.msra.mxu0 0.0
    %472 = vmatpush.msra.mxu0 0.0
    %473 = vmatpush.msra.mxu0 %v455
    %474 = vmatpush.msra.mxu0 %v454
    %475 = vmatpush.msra.mxu0 %v453
    %476 = vmatpush.msra.mxu0 %v452
    %477 = vmatmul.f32.gmra.mxu0 %v459
    %v478 = vpop.f32.mrf.mxu0
    %v479 = vadd.f32 0.0, %v478
    %480 = vdwg.mxu0
    %v481 = vadd.f32 %v451, %v479
    %v482 = vtanh.pop %v481
    %v483 = vmul.f32 %v138, %v482
    %v484 = vadd.f32 %v483, %v139
    %v485 = vmul.f32 %v484, %v366
    %487 = vrot.lane.b32.xlu0 %v484, 64
    %v488 = vpop.permute.xlu0 %487
    %v490 = vmul.f32 %v484, %v488
    %492 = vrot.lane.b32.xlu0 %v490, 32
    %v493 = vpop.permute.xlu0 %492
    %v495 = vadd.f32 %v485, %v493
    %v496 = vtanh.pop %v495
    %498 = vrot.lane.b32.xlu0 %v496, 64
    %v499 = vpop.permute.xlu0 %498
    %v501 = vmul.f32 %v484, %v499
    %v502 = vld [vmem:[%s4] sm:$0xff]
    %v503 = vld [vmem:[%s4 + $0x8] sm:$0xff]
    %v504 = vld [vmem:[%s4 + $0x10] sm:$0xff]
    %v505 = vld [vmem:[%s4 + $0x18] sm:$0xff]
    %506 = vmatpush.msra.mxu0 0.0
    %507 = vmatpush.msra.mxu0 0.0
    %508 = vmatpush.msra.mxu0 0.0
    %509 = vmatpush.msra.mxu0 0.0
    %510 = vmatpush.msra.mxu0 0.0
    %511 = vmatpush.msra.mxu0 0.0
    %512 = vmatpush.msra.mxu0 0.0
    %513 = vmatpush.msra.mxu0 0.0
    %514 = vmatpush.msra.mxu0 0.0
    %515 = vmatpush.msra.mxu0 0.0
    %516 = vmatpush.msra.mxu0 0.0
    %517 = vmatpush.msra.mxu0 0.0
    %518 = vmatpush.msra.mxu0 %v505
    %519 = vmatpush.msra.mxu0 %v504
    %520 = vmatpush.msra.mxu0 %v503
    %521 = vmatpush.msra.mxu0 %v502
    %522 = vmatmul.f32.gmra.mxu0 %v459
    %v523 = vpop.f32.mrf.mxu0
    %v524 = vadd.f32 %v249, %v523
    %525 = vdwg.mxu0
    %v526 = vld [vmem:[%s5] sm:$0xff]
    %v527 = vld [vmem:[%s5 + $0x8] sm:$0xff]
    %v528 = vld [vmem:[%s5 + $0x10] sm:$0xff]
    %v529 = vld [vmem:[%s5 + $0x18] sm:$0xff]
    %v530 = vsel %vm146, %v446, 0
    %532 = vmatpush.msra.mxu0 0.0
    %533 = vmatpush.msra.mxu0 0.0
    %534 = vmatpush.msra.mxu0 0.0
    %535 = vmatpush.msra.mxu0 0.0
    %536 = vmatpush.msra.mxu0 0.0
    %537 = vmatpush.msra.mxu0 0.0
    %538 = vmatpush.msra.mxu0 0.0
    %539 = vmatpush.msra.mxu0 0.0
    %540 = vmatpush.msra.mxu0 0.0
    %541 = vmatpush.msra.mxu0 0.0
    %542 = vmatpush.msra.mxu0 0.0
    %543 = vmatpush.msra.mxu0 0.0
    %544 = vmatpush.msra.mxu0 %v529
    %545 = vmatpush.msra.mxu0 %v528
    %546 = vmatpush.msra.mxu0 %v527
    %547 = vmatpush.msra.mxu0 %v526
    %548 = vmatmul.f32.gmra.mxu0 %v530
    %v549 = vpop.f32.mrf.mxu0
    %v550 = vadd.f32 0.0, %v549
    %551 = vdwg.mxu0
    %v552 = vadd.f32 %v524, %v550
    %v553 = vtanh.pop %v552
    %v554 = vmul.f32 %v138, %v553
    %v555 = vadd.f32 %v554, %v139
    %v556 = vmul.f32 %v555, %v437
    %558 = vrot.lane.b32.xlu0 %v555, 64
    %v559 = vpop.permute.xlu0 %558
    %v561 = vmul.f32 %v555, %v559
    %563 = vrot.lane.b32.xlu0 %v561, 32
    %v564 = vpop.permute.xlu0 %563
    %v566 = vadd.f32 %v556, %v564
    %v567 = vtanh.pop %v566
    %569 = vrot.lane.b32.xlu0 %v567, 64
    %v570 = vpop.permute.xlu0 %569
    %v572 = vmul.f32 %v555, %v570
    %574 = vrot.lane.b32.xlu0 %v572, 32
    %v575 = vpop.permute.xlu0 %574
    %s577 = scalar_lea.vmem [#allocation3], 16
    %578 = vst.msk [vmem:[%s577] sm:$0xff] %vm146, %v575
    %s579 = scalar_lea.vmem [#allocation2], 32
    %v580 = vld [vmem:[%s579] sm:$0xff]
    %v581 = vld [vmem:[%s2] sm:$0xff]
    %v582 = vld [vmem:[%s2 + $0x8] sm:$0xff]
    %v583 = vld [vmem:[%s2 + $0x10] sm:$0xff]
    %v584 = vld [vmem:[%s2 + $0x18] sm:$0xff]
    %586 = vrot.lane.b32.xlu0 %v501, 32
    %v587 = vpop.permute.xlu0 %586
    %v588 = vsel %vm146, %v587, 0
    %590 = vmatpush.msra.mxu0 0.0
    %591 = vmatpush.msra.mxu0 0.0
    %592 = vmatpush.msra.mxu0 0.0
    %593 = vmatpush.msra.mxu0 0.0
    %594 = vmatpush.msra.mxu0 0.0
    %595 = vmatpush.msra.mxu0 0.0
    %596 = vmatpush.msra.mxu0 0.0
    %597 = vmatpush.msra.mxu0 0.0
    %598 = vmatpush.msra.mxu0 0.0
    %599 = vmatpush.msra.mxu0 0.0
    %600 = vmatpush.msra.mxu0 0.0
    %601 = vmatpush.msra.mxu0 0.0
    %602 = vmatpush.msra.mxu0 %v584
    %603 = vmatpush.msra.mxu0 %v583
    %604 = vmatpush.msra.mxu0 %v582
    %605 = vmatpush.msra.mxu0 %v581
    %606 = vmatmul.f32.gmra.mxu0 %v588
    %v607 = vpop.f32.mrf.mxu0
    %v608 = vadd.f32 0.0, %v607
    %609 = vdwg.mxu0
    %v610 = vadd.f32 %v580, %v608
    %v611 = vtanh.pop %v610
    %v612 = vmul.f32 %v138, %v611
    %v613 = vadd.f32 %v612, %v139
    %v614 = vmul.f32 %v613, %v495
    %616 = vrot.lane.b32.xlu0 %v613, 64
    %v617 = vpop.permute.xlu0 %616
    %v619 = vmul.f32 %v613, %v617
    %621 = vrot.lane.b32.xlu0 %v619, 32
    %v622 = vpop.permute.xlu0 %621
    %v624 = vadd.f32 %v614, %v622
    %v625 = vtanh.pop %v624
    %627 = vrot.lane.b32.xlu0 %v625, 64
    %v628 = vpop.permute.xlu0 %627
    %v630 = vmul.f32 %v613, %v628
    %v631 = vld [vmem:[%s4] sm:$0xff]
    %v632 = vld [vmem:[%s4 + $0x8] sm:$0xff]
    %v633 = vld [vmem:[%s4 + $0x10] sm:$0xff]
    %v634 = vld [vmem:[%s4 + $0x18] sm:$0xff]
    %635 = vmatpush.msra.mxu0 0.0
    %636 = vmatpush.msra.mxu0 0.0
    %637 = vmatpush.msra.mxu0 0.0
    %638 = vmatpush.msra.mxu0 0.0
    %639 = vmatpush.msra.mxu0 0.0
    %640 = vmatpush.msra.mxu0 0.0
    %641 = vmatpush.msra.mxu0 0.0
    %642 = vmatpush.msra.mxu0 0.0
    %643 = vmatpush.msra.mxu0 0.0
    %644 = vmatpush.msra.mxu0 0.0
    %645 = vmatpush.msra.mxu0 0.0
    %646 = vmatpush.msra.mxu0 0.0
    %647 = vmatpush.msra.mxu0 %v634
    %648 = vmatpush.msra.mxu0 %v633
    %649 = vmatpush.msra.mxu0 %v632
    %650 = vmatpush.msra.mxu0 %v631
    %651 = vmatmul.f32.gmra.mxu0 %v588
    %v652 = vpop.f32.mrf.mxu0
    %v653 = vadd.f32 %v249, %v652
    %654 = vdwg.mxu0
    %v655 = vld [vmem:[%s5] sm:$0xff]
    %v656 = vld [vmem:[%s5 + $0x8] sm:$0xff]
    %v657 = vld [vmem:[%s5 + $0x10] sm:$0xff]
    %v658 = vld [vmem:[%s5 + $0x18] sm:$0xff]
    %v659 = vsel %vm146, %v575, 0
    %661 = vmatpush.msra.mxu0 0.0
    %662 = vmatpush.msra.mxu0 0.0
    %663 = vmatpush.msra.mxu0 0.0
    %664 = vmatpush.msra.mxu0 0.0
    %665 = vmatpush.msra.mxu0 0.0
    %666 = vmatpush.msra.mxu0 0.0
    %667 = vmatpush.msra.mxu0 0.0
    %668 = vmatpush.msra.mxu0 0.0
    %669 = vmatpush.msra.mxu0 0.0
    %670 = vmatpush.msra.mxu0 0.0
    %671 = vmatpush.msra.mxu0 0.0
    %672 = vmatpush.msra.mxu0 0.0
    %673 = vmatpush.msra.mxu0 %v658
    %674 = vmatpush.msra.mxu0 %v657
    %675 = vmatpush.msra.mxu0 %v656
    %676 = vmatpush.msra.mxu0 %v655
    %677 = vmatmul.f32.gmra.mxu0 %v659
    %v678 = vpop.f32.mrf.mxu0
    %v679 = vadd.f32 0.0, %v678
    %680 = vdwg.mxu0
    %v681 = vadd.f32 %v653, %v679
    %v682 = vtanh.pop %v681
    %v683 = vmul.f32 %v138, %v682
    %v684 = vadd.f32 %v683, %v139
    %v685 = vmul.f32 %v684, %v566
    %687 = vrot.lane.b32.xlu0 %v684, 64
    %v688 = vpop.permute.xlu0 %687
    %v690 = vmul.f32 %v684, %v688
    %692 = vrot.lane.b32.xlu0 %v690, 32
    %v693 = vpop.permute.xlu0 %692
    %v695 = vadd.f32 %v685, %v693
    %v696 = vtanh.pop %v695
    %698 = vrot.lane.b32.xlu0 %v696, 64
    %v699 = vpop.permute.xlu0 %698
    %v701 = vmul.f32 %v684, %v699
    %703 = vrot.lane.b32.xlu0 %v701, 32
    %v704 = vpop.permute.xlu0 %703
    %s706 = scalar_lea.vmem [#allocation3], 24
    %707 = vst.msk [vmem:[%s706] sm:$0xff] %vm146, %v704
    %s708 = scalar_lea.vmem [#allocation2], 40
    %v709 = vld [vmem:[%s708] sm:$0xff]
    %v710 = vld [vmem:[%s2] sm:$0xff]
    %v711 = vld [vmem:[%s2 + $0x8] sm:$0xff]
    %v712 = vld [vmem:[%s2 + $0x10] sm:$0xff]
    %v713 = vld [vmem:[%s2 + $0x18] sm:$0xff]
    %715 = vrot.lane.b32.xlu0 %v630, 32
    %v716 = vpop.permute.xlu0 %715
    %v717 = vsel %vm146, %v716, 0
    %719 = vmatpush.msra.mxu0 0.0
    %720 = vmatpush.msra.mxu0 0.0
    %721 = vmatpush.msra.mxu0 0.0
    %722 = vmatpush.msra.mxu0 0.0
    %723 = vmatpush.msra.mxu0 0.0
    %724 = vmatpush.msra.mxu0 0.0
    %725 = vmatpush.msra.mxu0 0.0
    %726 = vmatpush.msra.mxu0 0.0
    %727 = vmatpush.msra.mxu0 0.0
    %728 = vmatpush.msra.mxu0 0.0
    %729 = vmatpush.msra.mxu0 0.0
    %730 = vmatpush.msra.mxu0 0.0
    %731 = vmatpush.msra.mxu0 %v713
    %732 = vmatpush.msra.mxu0 %v712
    %733 = vmatpush.msra.mxu0 %v711
    %734 = vmatpush.msra.mxu0 %v710
    %735 = vmatmul.f32.gmra.mxu0 %v717
    %v736 = vpop.f32.mrf.mxu0
    %v737 = vadd.f32 0.0, %v736
    %738 = vdwg.mxu0
    %v739 = vadd.f32 %v709, %v737
    %v740 = vtanh.pop %v739
    %v741 = vmul.f32 %v138, %v740
    %v742 = vadd.f32 %v741, %v139
    %v743 = vmul.f32 %v742, %v624
    %745 = vrot.lane.b32.xlu0 %v742, 64
    %v746 = vpop.permute.xlu0 %745
    %v748 = vmul.f32 %v742, %v746
    %750 = vrot.lane.b32.xlu0 %v748, 32
    %v751 = vpop.permute.xlu0 %750
    %v753 = vadd.f32 %v743, %v751
    %v754 = vtanh.pop %v753
    %756 = vrot.lane.b32.xlu0 %v754, 64
    %v757 = vpop.permute.xlu0 %756
    %v759 = vmul.f32 %v742, %v757
    %v760 = vld [vmem:[%s4] sm:$0xff]
    %v761 = vld [vmem:[%s4 + $0x8] sm:$0xff]
    %v762 = vld [vmem:[%s4 + $0x10] sm:$0xff]
    %v763 = vld [vmem:[%s4 + $0x18] sm:$0xff]
    %764 = vmatpush.msra.mxu0 0.0
    %765 = vmatpush.msra.mxu0 0.0
    %766 = vmatpush.msra.mxu0 0.0
    %767 = vmatpush.msra.mxu0 0.0
    %768 = vmatpush.msra.mxu0 0.0
    %769 = vmatpush.msra.mxu0 0.0
    %770 = vmatpush.msra.mxu0 0.0
    %771 = vmatpush.msra.mxu0 0.0
    %772 = vmatpush.msra.mxu0 0.0
    %773 = vmatpush.msra.mxu0 0.0
    %774 = vmatpush.msra.mxu0 0.0
    %775 = vmatpush.msra.mxu0 0.0
    %776 = vmatpush.msra.mxu0 %v763
    %777 = vmatpush.msra.mxu0 %v762
    %778 = vmatpush.msra.mxu0 %v761
    %779 = vmatpush.msra.mxu0 %v760
    %780 = vmatmul.f32.gmra.mxu0 %v717
    %v781 = vpop.f32.mrf.mxu0
    %v782 = vadd.f32 %v249, %v781
    %783 = vdwg.mxu0
    %v784 = vld [vmem:[%s5] sm:$0xff]
    %v785 = vld [vmem:[%s5 + $0x8] sm:$0xff]
    %v786 = vld [vmem:[%s5 + $0x10] sm:$0xff]
    %v787 = vld [vmem:[%s5 + $0x18] sm:$0xff]
    %v788 = vsel %vm146, %v704, 0
    %790 = vmatpush.msra.mxu0 0.0
    %791 = vmatpush.msra.mxu0 0.0
    %792 = vmatpush.msra.mxu0 0.0
    %793 = vmatpush.msra.mxu0 0.0
    %794 = vmatpush.msra.mxu0 0.0
    %795 = vmatpush.msra.mxu0 0.0
    %796 = vmatpush.msra.mxu0 0.0
    %797 = vmatpush.msra.mxu0 0.0
    %798 = vmatpush.msra.mxu0 0.0
    %799 = vmatpush.msra.mxu0 0.0
    %800 = vmatpush.msra.mxu0 0.0
    %801 = vmatpush.msra.mxu0 0.0
    %802 = vmatpush.msra.mxu0 %v787
    %803 = vmatpush.msra.mxu0 %v786
    %804 = vmatpush.msra.mxu0 %v785
    %805 = vmatpush.msra.mxu0 %v784
    %806 = vmatmul.f32.gmra.mxu0 %v788
    %v807 = vpop.f32.mrf.mxu0
    %v808 = vadd.f32 0.0, %v807
    %809 = vdwg.mxu0
    %v810 = vadd.f32 %v782, %v808
    %v811 = vtanh.pop %v810
    %v812 = vmul.f32 %v138, %v811
    %v813 = vadd.f32 %v812, %v139
    %v814 = vmul.f32 %v813, %v695
    %816 = vrot.lane.b32.xlu0 %v813, 64
    %v817 = vpop.permute.xlu0 %816
    %v819 = vmul.f32 %v813, %v817
    %821 = vrot.lane.b32.xlu0 %v819, 32
    %v822 = vpop.permute.xlu0 %821
    %v824 = vadd.f32 %v814, %v822
    %v825 = vtanh.pop %v824
    %827 = vrot.lane.b32.xlu0 %v825, 64
    %v828 = vpop.permute.xlu0 %827
    %v830 = vmul.f32 %v813, %v828
    %832 = vrot.lane.b32.xlu0 %v830, 32
    %v833 = vpop.permute.xlu0 %832
    %s835 = scalar_lea.vmem [#allocation3], 32
    %836 = vst.msk [vmem:[%s835] sm:$0xff] %vm146, %v833
    %s837 = scalar_lea.vmem [#allocation2], 48
    %v838 = vld [vmem:[%s837] sm:$0xff]
    %v839 = vld [vmem:[%s2] sm:$0xff]
    %v840 = vld [vmem:[%s2 + $0x8] sm:$0xff]
    %v841 = vld [vmem:[%s2 + $0x10] sm:$0xff]
    %v842 = vld [vmem:[%s2 + $0x18] sm:$0xff]
    %844 = vrot.lane.b32.xlu0 %v759, 32
    %v845 = vpop.permute.xlu0 %844
    %v846 = vsel %vm146, %v845, 0
    %848 = vmatpush.msra.mxu0 0.0
    %849 = vmatpush.msra.mxu0 0.0
    %850 = vmatpush.msra.mxu0 0.0
    %851 = vmatpush.msra.mxu0 0.0
    %852 = vmatpush.msra.mxu0 0.0
    %853 = vmatpush.msra.mxu0 0.0
    %854 = vmatpush.msra.mxu0 0.0
    %855 = vmatpush.msra.mxu0 0.0
    %856 = vmatpush.msra.mxu0 0.0
    %857 = vmatpush.msra.mxu0 0.0
    %858 = vmatpush.msra.mxu0 0.0
    %859 = vmatpush.msra.mxu0 0.0
    %860 = vmatpush.msra.mxu0 %v842
    %861 = vmatpush.msra.mxu0 %v841
    %862 = vmatpush.msra.mxu0 %v840
    %863 = vmatpush.msra.mxu0 %v839
    %864 = vmatmul.f32.gmra.mxu0 %v846
    %v865 = vpop.f32.mrf.mxu0
    %v866 = vadd.f32 0.0, %v865
    %867 = vdwg.mxu0
    %v868 = vadd.f32 %v838, %v866
    %v869 = vtanh.pop %v868
    %v870 = vmul.f32 %v138, %v869
    %v871 = vadd.f32 %v870, %v139
    %v872 = vmul.f32 %v871, %v753
    %874 = vrot.lane.b32.xlu0 %v871, 64
    %v875 = vpop.permute.xlu0 %874
    %v877 = vmul.f32 %v871, %v875
    %879 = vrot.lane.b32.xlu0 %v877, 32
    %v880 = vpop.permute.xlu0 %879
    %v882 = vadd.f32 %v872, %v880
    %v883 = vtanh.pop %v882
    %885 = vrot.lane.b32.xlu0 %v883, 64
    %v886 = vpop.permute.xlu0 %885
    %v888 = vmul.f32 %v871, %v886
    %v889 = vld [vmem:[%s4] sm:$0xff]
    %v890 = vld [vmem:[%s4 + $0x8] sm:$0xff]
    %v891 = vld [vmem:[%s4 + $0x10] sm:$0xff]
    %v892 = vld [vmem:[%s4 + $0x18] sm:$0xff]
    %893 = vmatpush.msra.mxu0 0.0
    %894 = vmatpush.msra.mxu0 0.0
    %895 = vmatpush.msra.mxu0 0.0
    %896 = vmatpush.msra.mxu0 0.0
    %897 = vmatpush.msra.mxu0 0.0
    %898 = vmatpush.msra.mxu0 0.0
    %899 = vmatpush.msra.mxu0 0.0
    %900 = vmatpush.msra.mxu0 0.0
    %901 = vmatpush.msra.mxu0 0.0
    %902 = vmatpush.msra.mxu0 0.0
    %903 = vmatpush.msra.mxu0 0.0
    %904 = vmatpush.msra.mxu0 0.0
    %905 = vmatpush.msra.mxu0 %v892
    %906 = vmatpush.msra.mxu0 %v891
    %907 = vmatpush.msra.mxu0 %v890
    %908 = vmatpush.msra.mxu0 %v889
    %909 = vmatmul.f32.gmra.mxu0 %v846
    %v910 = vpop.f32.mrf.mxu0
    %v911 = vadd.f32 %v249, %v910
    %912 = vdwg.mxu0
    %v913 = vld [vmem:[%s5] sm:$0xff]
    %v914 = vld [vmem:[%s5 + $0x8] sm:$0xff]
    %v915 = vld [vmem:[%s5 + $0x10] sm:$0xff]
    %v916 = vld [vmem:[%s5 + $0x18] sm:$0xff]
    %v917 = vsel %vm146, %v833, 0
    %919 = vmatpush.msra.mxu0 0.0
    %920 = vmatpush.msra.mxu0 0.0
    %921 = vmatpush.msra.mxu0 0.0
    %922 = vmatpush.msra.mxu0 0.0
    %923 = vmatpush.msra.mxu0 0.0
    %924 = vmatpush.msra.mxu0 0.0
    %925 = vmatpush.msra.mxu0 0.0
    %926 = vmatpush.msra.mxu0 0.0
    %927 = vmatpush.msra.mxu0 0.0
    %928 = vmatpush.msra.mxu0 0.0
    %929 = vmatpush.msra.mxu0 0.0
    %930 = vmatpush.msra.mxu0 0.0
    %931 = vmatpush.msra.mxu0 %v916
    %932 = vmatpush.msra.mxu0 %v915
    %933 = vmatpush.msra.mxu0 %v914
    %934 = vmatpush.msra.mxu0 %v913
    %935 = vmatmul.f32.gmra.mxu0 %v917
    %v936 = vpop.f32.mrf.mxu0
    %v937 = vadd.f32 0.0, %v936
    %938 = vdwg.mxu0
    %v939 = vadd.f32 %v911, %v937
    %v940 = vtanh.pop %v939
    %v941 = vmul.f32 %v138, %v940
    %v942 = vadd.f32 %v941, %v139
    %v943 = vmul.f32 %v942, %v824
    %945 = vrot.lane.b32.xlu0 %v942, 64
    %v946 = vpop.permute.xlu0 %945
    %v948 = vmul.f32 %v942, %v946
    %950 = vrot.lane.b32.xlu0 %v948, 32
    %v951 = vpop.permute.xlu0 %950
    %v953 = vadd.f32 %v943, %v951
    %v954 = vtanh.pop %v953
    %956 = vrot.lane.b32.xlu0 %v954, 64
    %v957 = vpop.permute.xlu0 %956
    %v959 = vmul.f32 %v942, %v957
    %961 = vrot.lane.b32.xlu0 %v959, 32
    %v962 = vpop.permute.xlu0 %961
    %s964 = scalar_lea.vmem [#allocation3], 40
    %965 = vst.msk [vmem:[%s964] sm:$0xff] %vm146, %v962
    %s966 = scalar_lea.vmem [#allocation2], 56
    %v967 = vld [vmem:[%s966] sm:$0xff]
    %v968 = vld [vmem:[%s2] sm:$0xff]
    %v969 = vld [vmem:[%s2 + $0x8] sm:$0xff]
    %v970 = vld [vmem:[%s2 + $0x10] sm:$0xff]
    %v971 = vld [vmem:[%s2 + $0x18] sm:$0xff]
    %973 = vrot.lane.b32.xlu0 %v888, 32
    %v974 = vpop.permute.xlu0 %973
    %v975 = vsel %vm146, %v974, 0
    %977 = vmatpush.msra.mxu0 0.0
    %978 = vmatpush.msra.mxu0 0.0
    %979 = vmatpush.msra.mxu0 0.0
    %980 = vmatpush.msra.mxu0 0.0
    %981 = vmatpush.msra.mxu0 0.0
    %982 = vmatpush.msra.mxu0 0.0
    %983 = vmatpush.msra.mxu0 0.0
    %984 = vmatpush.msra.mxu0 0.0
    %985 = vmatpush.msra.mxu0 0.0
    %986 = vmatpush.msra.mxu0 0.0
    %987 = vmatpush.msra.mxu0 0.0
    %988 = vmatpush.msra.mxu0 0.0
    %989 = vmatpush.msra.mxu0 %v971
    %990 = vmatpush.msra.mxu0 %v970
    %991 = vmatpush.msra.mxu0 %v969
    %992 = vmatpush.msra.mxu0 %v968
    %993 = vmatmul.f32.gmra.mxu0 %v975
    %v994 = vpop.f32.mrf.mxu0
    %v995 = vadd.f32 0.0, %v994
    %996 = vdwg.mxu0
    %v997 = vadd.f32 %v967, %v995
    %v998 = vtanh.pop %v997
    %v999 = vmul.f32 %v138, %v998
    %v1000 = vadd.f32 %v999, %v139
    %v1001 = vmul.f32 %v1000, %v882
    %1003 = vrot.lane.b32.xlu0 %v1000, 64
    %v1004 = vpop.permute.xlu0 %1003
    %v1006 = vmul.f32 %v1000, %v1004
    %1008 = vrot.lane.b32.xlu0 %v1006, 32
    %v1009 = vpop.permute.xlu0 %1008
    %v1011 = vadd.f32 %v1001, %v1009
    %v1012 = vtanh.pop %v1011
    %1014 = vrot.lane.b32.xlu0 %v1012, 64
    %v1015 = vpop.permute.xlu0 %1014
    %v1017 = vmul.f32 %v1000, %v1015
    %v1018 = vld [vmem:[%s4] sm:$0xff]
    %v1019 = vld [vmem:[%s4 + $0x8] sm:$0xff]
    %v1020 = vld [vmem:[%s4 + $0x10] sm:$0xff]
    %v1021 = vld [vmem:[%s4 + $0x18] sm:$0xff]
    %1022 = vmatpush.msra.mxu0 0.0
    %1023 = vmatpush.msra.mxu0 0.0
    %1024 = vmatpush.msra.mxu0 0.0
    %1025 = vmatpush.msra.mxu0 0.0
    %1026 = vmatpush.msra.mxu0 0.0
    %1027 = vmatpush.msra.mxu0 0.0
    %1028 = vmatpush.msra.mxu0 0.0
    %1029 = vmatpush.msra.mxu0 0.0
    %1030 = vmatpush.msra.mxu0 0.0
    %1031 = vmatpush.msra.mxu0 0.0
    %1032 = vmatpush.msra.mxu0 0.0
    %1033 = vmatpush.msra.mxu0 0.0
    %1034 = vmatpush.msra.mxu0 %v1021
    %1035 = vmatpush.msra.mxu0 %v1020
    %1036 = vmatpush.msra.mxu0 %v1019
    %1037 = vmatpush.msra.mxu0 %v1018
    %1038 = vmatmul.f32.gmra.mxu0 %v975
    %v1039 = vpop.f32.mrf.mxu0
    %v1040 = vadd.f32 %v249, %v1039
    %1041 = vdwg.mxu0
    %v1042 = vld [vmem:[%s5] sm:$0xff]
    %v1043 = vld [vmem:[%s5 + $0x8] sm:$0xff]
    %v1044 = vld [vmem:[%s5 + $0x10] sm:$0xff]
    %v1045 = vld [vmem:[%s5 + $0x18] sm:$0xff]
    %v1046 = vsel %vm146, %v962, 0
    %1048 = vmatpush.msra.mxu0 0.0
    %1049 = vmatpush.msra.mxu0 0.0
    %1050 = vmatpush.msra.mxu0 0.0
    %1051 = vmatpush.msra.mxu0 0.0
    %1052 = vmatpush.msra.mxu0 0.0
    %1053 = vmatpush.msra.mxu0 0.0
    %1054 = vmatpush.msra.mxu0 0.0
    %1055 = vmatpush.msra.mxu0 0.0
    %1056 = vmatpush.msra.mxu0 0.0
    %1057 = vmatpush.msra.mxu0 0.0
    %1058 = vmatpush.msra.mxu0 0.0
    %1059 = vmatpush.msra.mxu0 0.0
    %1060 = vmatpush.msra.mxu0 %v1045
    %1061 = vmatpush.msra.mxu0 %v1044
    %1062 = vmatpush.msra.mxu0 %v1043
    %1063 = vmatpush.msra.mxu0 %v1042
    %1064 = vmatmul.f32.gmra.mxu0 %v1046
    %v1065 = vpop.f32.mrf.mxu0
    %v1066 = vadd.f32 0.0, %v1065
    %1067 = vdwg.mxu0
    %v1068 = vadd.f32 %v1040, %v1066
    %v1069 = vtanh.pop %v1068
    %v1070 = vmul.f32 %v138, %v1069
    %v1071 = vadd.f32 %v1070, %v139
    %v1072 = vmul.f32 %v1071, %v953
    %1074 = vrot.lane.b32.xlu0 %v1071, 64
    %v1075 = vpop.permute.xlu0 %1074
    %v1077 = vmul.f32 %v1071, %v1075
    %1079 = vrot.lane.b32.xlu0 %v1077, 32
    %v1080 = vpop.permute.xlu0 %1079
    %v1082 = vadd.f32 %v1072, %v1080
    %v1083 = vtanh.pop %v1082
    %1085 = vrot.lane.b32.xlu0 %v1083, 64
    %v1086 = vpop.permute.xlu0 %1085
    %v1088 = vmul.f32 %v1071, %v1086
    %1090 = vrot.lane.b32.xlu0 %v1088, 32
    %v1091 = vpop.permute.xlu0 %1090
    %s1093 = scalar_lea.vmem [#allocation3], 48
    %1094 = vst.msk [vmem:[%s1093] sm:$0xff] %vm146, %v1091
    %v1095 = vld [vmem:[%s4] sm:$0xff]
    %v1096 = vld [vmem:[%s4 + $0x8] sm:$0xff]
    %v1097 = vld [vmem:[%s4 + $0x10] sm:$0xff]
    %v1098 = vld [vmem:[%s4 + $0x18] sm:$0xff]
    %1100 = vrot.lane.b32.xlu0 %v1017, 32
    %v1101 = vpop.permute.xlu0 %1100
    %v1102 = vsel %vm146, %v1101, 0
    %1104 = vmatpush.msra.mxu0 0.0
    %1105 = vmatpush.msra.mxu0 0.0
    %1106 = vmatpush.msra.mxu0 0.0
    %1107 = vmatpush.msra.mxu0 0.0
    %1108 = vmatpush.msra.mxu0 0.0
    %1109 = vmatpush.msra.mxu0 0.0
    %1110 = vmatpush.msra.mxu0 0.0
    %1111 = vmatpush.msra.mxu0 0.0
    %1112 = vmatpush.msra.mxu0 0.0
    %1113 = vmatpush.msra.mxu0 0.0
    %1114 = vmatpush.msra.mxu0 0.0
    %1115 = vmatpush.msra.mxu0 0.0
    %1116 = vmatpush.msra.mxu0 %v1098
    %1117 = vmatpush.msra.mxu0 %v1097
    %1118 = vmatpush.msra.mxu0 %v1096
    %1119 = vmatpush.msra.mxu0 %v1095
    %1120 = vmatmul.f32.gmra.mxu0 %v1102
    %v1121 = vpop.f32.mrf.mxu0
    %v1122 = vadd.f32 %v249, %v1121
    %1123 = vdwg.mxu0
    %v1124 = vld [vmem:[%s5] sm:$0xff]
    %v1125 = vld [vmem:[%s5 + $0x8] sm:$0xff]
    %v1126 = vld [vmem:[%s5 + $0x10] sm:$0xff]
    %v1127 = vld [vmem:[%s5 + $0x18] sm:$0xff]
    %v1128 = vsel %vm146, %v1091, 0
    %1130 = vmatpush.msra.mxu0 0.0
    %1131 = vmatpush.msra.mxu0 0.0
    %1132 = vmatpush.msra.mxu0 0.0
    %1133 = vmatpush.msra.mxu0 0.0
    %1134 = vmatpush.msra.mxu0 0.0
    %1135 = vmatpush.msra.mxu0 0.0
    %1136 = vmatpush.msra.mxu0 0.0
    %1137 = vmatpush.msra.mxu0 0.0
    %1138 = vmatpush.msra.mxu0 0.0
    %1139 = vmatpush.msra.mxu0 0.0
    %1140 = vmatpush.msra.mxu0 0.0
    %1141 = vmatpush.msra.mxu0 0.0
    %1142 = vmatpush.msra.mxu0 %v1127
    %1143 = vmatpush.msra.mxu0 %v1126
    %1144 = vmatpush.msra.mxu0 %v1125
    %1145 = vmatpush.msra.mxu0 %v1124
    %1146 = vmatmul.f32.gmra.mxu0 %v1128
    %v1147 = vpop.f32.mrf.mxu0
    %v1148 = vadd.f32 0.0, %v1147
    %1149 = vdwg.mxu0
    %v1150 = vadd.f32 %v1122, %v1148
    %v1151 = vtanh.pop %v1150
    %v1152 = vmul.f32 %v138, %v1151
    %v1153 = vadd.f32 %v1152, %v139
    %v1154 = vmul.f32 %v1153, %v1082
    %1156 = vrot.lane.b32.xlu0 %v1153, 64
    %v1157 = vpop.permute.xlu0 %1156
    %v1159 = vmul.f32 %v1153, %v1157
    %1161 = vrot.lane.b32.xlu0 %v1159, 32
    %v1162 = vpop.permute.xlu0 %1161
    %v1164 = vadd.f32 %v1154, %v1162
    %v1165 = vtanh.pop %v1164
    %1167 = vrot.lane.b32.xlu0 %v1165, 64
    %v1168 = vpop.permute.xlu0 %1167
    %v1170 = vmul.f32 %v1153, %v1168
    %1172 = vrot.lane.b32.xlu0 %v1170, 32
    %v1173 = vpop.permute.xlu0 %1172
    %s1175 = scalar_lea.vmem [#allocation3], 56
    %1176 = vst.msk [vmem:[%s1175] sm:$0xff] %vm146, %v1173
    %v1177 = vlaneseq
    %v1178 = vshrl.u32 %v1177, 7
    %v1179 = vmul.u32 %v1178, 8
    %vm1180 = vcmp.eq.s32.totalorder %v134, %v1179
    %v1181 = vsel %vm1180, 1, 0
    %v1182 = vcvt.s32.f32 %v1181
    %v1183 = vld [vmem:[#allocation3] sm:$0xff]
    %v1184 = vld [vmem:[#allocation3 + $0x8] sm:$0xff]
    %v1185 = vld [vmem:[#allocation3 + $0x10] sm:$0xff]
    %v1186 = vld [vmem:[#allocation3 + $0x18] sm:$0xff]
    %v1187 = vld [vmem:[#allocation3 + $0x20] sm:$0xff]
    %v1188 = vld [vmem:[#allocation3 + $0x28] sm:$0xff]
    %v1189 = vld [vmem:[#allocation3 + $0x30] sm:$0xff]
    %v1190 = vld [vmem:[#allocation3 + $0x38] sm:$0xff]
    %vm1191 = vcmask 523264
    %v1193 = vsel %vm1191, %v1182, 0
    %1195 = vmatpush.msra.mxu0 0.0
    %1196 = vmatpush.msra.mxu0 0.0
    %1197 = vmatpush.msra.mxu0 0.0
    %1198 = vmatpush.msra.mxu0 0.0
    %1199 = vmatpush.msra.mxu0 0.0
    %1200 = vmatpush.msra.mxu0 0.0
    %1201 = vmatpush.msra.mxu0 0.0
    %1202 = vmatpush.msra.mxu0 0.0
    %1203 = vmatpush.msra.mxu0 %v1190
    %1204 = vmatpush.msra.mxu0 %v1189
    %1205 = vmatpush.msra.mxu0 %v1188
    %1206 = vmatpush.msra.mxu0 %v1187
    %1207 = vmatpush.msra.mxu0 %v1186
    %1208 = vmatpush.msra.mxu0 %v1185
    %1209 = vmatpush.msra.mxu0 %v1184
    %1210 = vmatpush.msra.mxu0 %v1183
    %1211 = vmatmul.f32.gmra.mxu0 %v1193
    %v1212 = vpop.f32.mrf.mxu0
    %v1213 = vadd.f32 0.0, %v1212
    %1214 = vdwg.mxu0
    %v1215 = vld [vmem:[%s7] sm:$0xff]
    %v1216 = vld [vmem:[%s7 + $0x8] sm:$0xff]
    %v1217 = vld [vmem:[%s7 + $0x10] sm:$0xff]
    %v1218 = vld [vmem:[%s7 + $0x18] sm:$0xff]
    %v1219 = vld [vmem:[%s8] sm:$0x1]
    %v1221 = vperm.slane %v1219, 0
    %v1224 = vsel %vm146, %v1213, 0
    %1226 = vmatpush.msra.mxu0 0.0
    %1227 = vmatpush.msra.mxu0 0.0
    %1228 = vmatpush.msra.mxu0 0.0
    %1229 = vmatpush.msra.mxu0 0.0
    %1230 = vmatpush.msra.mxu0 0.0
    %1231 = vmatpush.msra.mxu0 0.0
    %1232 = vmatpush.msra.mxu0 0.0
    %1233 = vmatpush.msra.mxu0 0.0
    %1234 = vmatpush.msra.mxu0 0.0
    %1235 = vmatpush.msra.mxu0 0.0
    %1236 = vmatpush.msra.mxu0 0.0
    %1237 = vmatpush.msra.mxu0 0.0
    %1238 = vmatpush.msra.mxu0 %v1218
    %1239 = vmatpush.msra.mxu0 %v1217
    %1240 = vmatpush.msra.mxu0 %v1216
    %1241 = vmatpush.msra.mxu0 %v1215
    %1242 = vmatmul.f32.gmra.mxu0 %v1224
    %v1243 = vpop.f32.mrf.mxu0
    %v1244 = vadd.f32 %v1221, %v1243
    %1245 = vdwg.mxu0
    %vm1246 = vcmask 31744
    %1247 = vst.msk [vmem:[%s9] sm:$0xff] %vm1246, %v1244
    // Predicated region
    $region42: #{tpu_custom_call.1} parent=1 // pred_check
      _
    $region43: #{tpu_custom_call.1} parent=1 // pred_check_branch
      %1249 = sbr.rel (0) target = $region45
    $region44: #{tpu_custom_call.1} parent=1 // pred_region
      _
    $region45: #{tpu_custom_call.1} parent=1 // pred_fallthru
      _
    // Predicated region
    $region46: #{tpu_custom_call.1} parent=1 // pred_check
      _
    $region47: #{tpu_custom_call.1} parent=1 // pred_check_branch
      %1251 = sbr.rel (0) target = $region49
    $region48: #{tpu_custom_call.1} parent=1 // pred_region
      _
    $region49: #{tpu_custom_call.1} parent=1 // pred_fallthru
      _
    %1252 = vsyncpa [#allocation5], 1

</llo_original>
